<compile_context>
chip_gen: v6e
topology: v6e:2x2x1
jax: 0.10.0
libtpu: 0.0.40
codegen_flags: <defaults>
</compile_context>

<pallas_src>
import functools

import jax
import jax.numpy as jnp
from jax import lax
from jax.experimental import pallas as pl
from jax.experimental.pallas import tpu as pltpu


def _pad_up(x, m):
    return ((x + m - 1) // m) * m


def _vmem_capacity_bytes():
    try:
        info = pltpu.get_tpu_info()
        cap = getattr(info, "vmem_capacity_bytes", None)
        if cap:
            return int(cap)
    except Exception:
        pass
    return 128 * 1024 * 1024


def _choose_tq(n, fits, cap=512):
    """Largest query tile (a multiple-of-8 divisor of n, or n itself) that fits VMEM."""
    cands = []
    if n <= cap:
        cands.append(n)
    cands += [t for t in range(min(n, cap) // 8 * 8, 7, -8) if n % t == 0]
    for t in cands:
        if fits(t):
            return t
    for t in range(8, n + 1, 8):          # fallback: smallest multiple-of-8 divisor
        if n % t == 0:
            return t
    return n


def _mhsa_kernel(x_ref, wq_ref, bq_ref, k_ref, v_ref, wo_ref, o_ref, attn_ref,
                 *, heads, key_size, attn_scale, compute_dtype, exact_softmax):
    # ---- Q projection for this query tile: one fused, lane-dense matmul.
    q2d = jnp.dot(x_ref[...], wq_ref[...],
                  preferred_element_type=jnp.float32) + bq_ref[...]        # (TQ, heads*K) f32

    o_acc = None
    for h in range(heads):                                                 # static unroll
        qh = q2d[:, h * key_size:(h + 1) * key_size].astype(compute_dtype)  # (TQ, K)

        # scores = scale * Q K^T  (contract last-vs-last; output lanes = N, dense).
        s = lax.dot_general(qh, k_ref[h],
                            dimension_numbers=(((1,), (1,)), ((), ())),
                            preferred_element_type=jnp.float32) * attn_scale  # (TQ, N) f32
        attn_ref[h] = s.astype(attn_ref.dtype)        # raw scaled pre-softmax scores

        # ---- softmax (f32, max-stabilized).
        m = jnp.max(s, axis=-1, keepdims=True)
        p = jnp.exp(s - m)
        denom = jnp.sum(p, axis=-1, keepdims=True)
        if exact_softmax:
            a = p / denom
        else:
            a = p * pl.reciprocal(denom, approx=True)
        # attn_dropout: p=0.0 / eval mode -> identity (no-op)

        # ---- o_h = A @ V, then output projection accumulated over heads.
        oh = jnp.dot(a.astype(compute_dtype), v_ref[h],
                     preferred_element_type=jnp.float32)                    # (TQ, D)
        contrib = jnp.dot(oh.astype(compute_dtype), wo_ref[h],
                          preferred_element_type=jnp.float32)               # (TQ, out)
        o_acc = contrib if o_acc is None else o_acc + contrib

    o_ref[...] = o_acc.astype(o_ref.dtype)
    # proj_dropout: p=0.0 / eval mode -> identity (no-op)


def mhsa_forward(x, wi, bi, wo, *, heads, key_size, head_size,
                 attn_scale=None, compute_dtype=jnp.float32,
                 attn_dtype=jnp.float32, tq=None):
    """x: (B, N, Cin); wi: (Cin, heads*(2K+D)); bi: (1, same); wo: (heads*D, out).
    Returns (o (B,N,out) f32, scores (B,heads,N,N) attn_dtype)."""
    B, N, Cin = x.shape
    out_size = wo.shape[1]
    hk = heads * key_size
    hd = heads * head_size
    if attn_scale is None:
        attn_scale = float(key_size) ** (-0.5)
    cbytes = jnp.dtype(compute_dtype).itemsize
    abytes = jnp.dtype(attn_dtype).itemsize

    # --- i_linear split: Q weights feed the kernel; K/V are projected here with one
    #     fused lane-dense matmul and become per-batch kernel inputs (prefetchable).
    wq2d = wi[:, :hk].astype(compute_dtype)                        # (Cin, heads*K)
    bq2d = bi[:, :hk].astype(jnp.float32)                          # (1, heads*K)
    base_kv = jnp.dot(x, wi[:, hk:]) + bi[:, hk:]                  # (B, N, heads*(K+D)) f32
    k = base_kv[..., :hk].reshape(B, N, heads, key_size)
    k = k.transpose(0, 2, 1, 3).astype(compute_dtype)              # (B, heads, N, K)
    v = base_kv[..., hk:].reshape(B, N, heads, head_size)
    v = v.transpose(0, 2, 1, 3).astype(compute_dtype)              # (B, heads, N, D)
    wo_h = wo.reshape(heads, head_size, out_size).astype(compute_dtype)  # (heads, D, out)
    x_c = x.astype(compute_dtype)

    # --- generation-aware VMEM budget and query-tile selection.
    phys = _vmem_capacity_bytes()                 # 64 MiB on v7x, 128 MiB on v5e/v6e
    budget = int(phys * 0.70)

    def vmem_est(t):
        est = 2 * _pad_up(t, 8) * _pad_up(Cin, 128) * cbytes                       # x block
        est += 2 * heads * _pad_up(N, 8) * (_pad_up(key_size, 128)
                                            + _pad_up(head_size, 128)) * cbytes    # K, V
        est += 2 * (_pad_up(Cin, 8) * _pad_up(hk, 128) + _pad_up(hk, 128)) * cbytes  # wq, bq
        est += 2 * heads * _pad_up(head_size, 8) * _pad_up(out_size, 128) * cbytes   # wo
        est += 2 * _pad_up(t, 8) * _pad_up(out_size, 128) * 4                        # o out
        est += 2 * heads * _pad_up(t, 8) * _pad_up(N, 128) * abytes                  # attn out
        est += 6 * _pad_up(t, 8) * _pad_up(N, 128) * 4                               # live temps
        return est

    if tq is None:
        tq = _choose_tq(N, lambda t: vmem_est(t) <= budget)
    assert N % tq == 0, f"query tile {tq} must divide N={N}"
    nt = N // tq
    est = vmem_est(tq)
    vmem_limit = int(min(int(phys * 0.75), max(32 * 2 ** 20, 2 * est)))

    cost = pl.CostEstimate(
        flops=int(2 * B * N * Cin * hk
                  + 2 * B * heads * N * N * (key_size + head_size)
                  + 2 * B * N * hd * out_size),
        transcendentals=int(B * heads * N * N),
        bytes_accessed=int(cbytes * (x.size + wq2d.size + k.size + v.size + wo_h.size)
                           + 4 * (bq2d.size + B * N * out_size)
                           + abytes * B * heads * N * N),
    )

    exact_softmax = jnp.dtype(compute_dtype) == jnp.dtype(jnp.float32)
    kernel = functools.partial(
        _mhsa_kernel, heads=heads, key_size=key_size, attn_scale=attn_scale,
        compute_dtype=compute_dtype, exact_softmax=exact_softmax)

    return pl.pallas_call(
        kernel,
        out_shape=(
            jax.ShapeDtypeStruct((B, N, out_size), jnp.float32),
            jax.ShapeDtypeStruct((B, heads, N, N), attn_dtype),
        ),
        grid_spec=pltpu.PrefetchScalarGridSpec(
            num_scalar_prefetch=0,
            grid=(B, nt),
            in_specs=[
                pl.BlockSpec((None, tq, Cin), lambda b, t: (b, t, 0)),                 # x tile
                pl.BlockSpec((Cin, hk), lambda b, t: (0, 0)),                          # Wq (fused)
                pl.BlockSpec((1, hk), lambda b, t: (0, 0)),                            # bq
                pl.BlockSpec((None, heads, N, key_size), lambda b, t: (b, 0, 0, 0)),   # K
                pl.BlockSpec((None, heads, N, head_size), lambda b, t: (b, 0, 0, 0)),  # V
                pl.BlockSpec((heads, head_size, out_size), lambda b, t: (0, 0, 0)),    # Wo
            ],
            out_specs=(
                pl.BlockSpec((None, tq, out_size), lambda b, t: (b, t, 0)),
                pl.BlockSpec((None, heads, tq, N), lambda b, t: (b, 0, t, 0)),
            ),
        ),
        compiler_params=pltpu.CompilerParams(
            # Every (batch, query-tile) point is independent (K/V are inputs, no
            # cross-tile scratch carry) -> both axes parallel (feeds both TCs on v7x).
            dimension_semantics=("parallel", "parallel"),
            vmem_limit_bytes=vmem_limit),
        cost_estimate=cost,
    )(x_c, wq2d, bq2d, k, v, wo_h)


def reference_forward(x, wi, bi, wo, *, heads, key_size, head_size):
    """Pure-JAX reference mirroring the PyTorch module (eval mode)."""
    B, N, _ = x.shape
    attn_scale = float(key_size) ** (-0.5)
    base = x @ wi + bi[0]
    hk = heads * key_size
    q = base[..., :hk].reshape(B, N, heads, key_size).transpose(0, 2, 1, 3)
    k = base[..., hk:2 * hk].reshape(B, N, heads, key_size).transpose(0, 2, 1, 3)
    v = base[..., 2 * hk:].reshape(B, N, heads, head_size).transpose(0, 2, 1, 3)
    scores = jnp.einsum('bhid,bhjd->bhij', q, k) * attn_scale
    a = jax.nn.softmax(scores, axis=-1)
    o = jnp.einsum('bhij,bhjd->bhid', a, v)
    o = o.transpose(0, 2, 1, 3).reshape(B, N, heads * head_size)
    return o @ wo, scores


if __name__ == "__main__":
    # Small shapes consistent with the module's forward (inputs are (B, H, W, C)).
    B, H, W = 2, 8, 8
    in_size = 32
    heads = 2
    head_size = 16
    key_size = head_size                 # default key_size = head_size
    out_size = heads * head_size         # default out_size
    N = H * W
    Ctot = heads * (2 * key_size + head_size)

    key = jax.random.PRNGKey(0)
    kx, kwi, kbi, kwo = jax.random.split(key, 4)
    x_bhwc = jax.random.normal(kx, (B, H, W, in_size), dtype=jnp.float32)
    wi = jax.random.normal(kwi, (in_size, Ctot), dtype=jnp.float32) * 0.05
    bi = jax.random.normal(kbi, (1, Ctot), dtype=jnp.float32) * 0.05
    wo = jax.random.normal(kwo, (heads * head_size, out_size), dtype=jnp.float32) * 0.05

    x = x_bhwc.reshape(B, N, in_size)
    o_expected, attn_expected = reference_forward(
        x, wi, bi, wo, heads=heads, key_size=key_size, head_size=head_size)

    # f32 path (tight check, exact softmax normalization).
    o, attn = mhsa_forward(x, wi, bi, wo, heads=heads, key_size=key_size,
                           head_size=head_size, compute_dtype=jnp.float32)
    jax.block_until_ready((o, attn))
    assert jnp.allclose(attn, attn_expected, atol=2e-4, rtol=2e-4), "attn mismatch (f32)"
    assert jnp.allclose(o, o_expected, atol=5e-3, rtol=5e-3), "output mismatch (f32)"

    # bf16 MXU operands with f32 accumulation (perf path; loose check).
    o16, attn16 = mhsa_forward(x, wi, bi, wo, heads=heads, key_size=key_size,
                               head_size=head_size, compute_dtype=jnp.bfloat16)
    jax.block_until_ready((o16, attn16))
    assert jnp.allclose(attn16, attn_expected, atol=5e-2, rtol=5e-2), "attn mismatch (bf16)"
    assert jnp.allclose(o16, o_expected, atol=5e-2, rtol=5e-2), "output mismatch (bf16)"

    o_bhwc = o.reshape(B, H, W, out_size)   # final module output layout (B, H, W, out_size)
    jax.block_until_ready(o_bhwc)
    print("KERNEL_OK")
</pallas_src>

<mosaic_0001>
module attributes {stable_mosaic.version = 11 : i64} {
  func.func @_mhsa_kernel(%arg0: i32, %arg1: i32, %arg2: memref<1x64x32xf32, #tpu.memory_space<vmem>>, %arg3: memref<32x32xf32, #tpu.memory_space<vmem>>, %arg4: memref<1x32xf32, #tpu.memory_space<vmem>>, %arg5: memref<1x2x64x16xf32, #tpu.memory_space<vmem>>, %arg6: memref<1x2x64x16xf32, #tpu.memory_space<vmem>>, %arg7: memref<2x16x32xf32, #tpu.memory_space<vmem>>, %arg8: memref<1x64x32xf32, #tpu.memory_space<vmem>>, %arg9: memref<1x2x64x64xf32, #tpu.memory_space<vmem>>) attributes {dimension_semantics = [#tpu.dimension_semantics<parallel>, #tpu.dimension_semantics<parallel>], iteration_bounds = array<i64: 2, 1>, scalar_prefetch = 0 : i64, scratch_operands = 0 : i64, tpu.core_type = #tpu.core_type<tc>, window_params = [{transform_indices = @transform_0, window_bounds = array<i64: 1, 64, 32>}, {pipeline_mode = #tpu.pipeline_mode<synchronous>, transform_indices = @transform_1, window_bounds = array<i64: 32, 32>}, {pipeline_mode = #tpu.pipeline_mode<synchronous>, transform_indices = @transform_2, window_bounds = array<i64: 1, 32>}, {transform_indices = @transform_3, window_bounds = array<i64: 1, 2, 64, 16>}, {transform_indices = @transform_4, window_bounds = array<i64: 1, 2, 64, 16>}, {pipeline_mode = #tpu.pipeline_mode<synchronous>, transform_indices = @transform_5, window_bounds = array<i64: 2, 16, 32>}, {transform_indices = @transform_6, window_bounds = array<i64: 1, 64, 32>}, {transform_indices = @transform_7, window_bounds = array<i64: 1, 2, 64, 64>}]} {
    %c0 = arith.constant 0 : index
    %c0_0 = arith.constant 0 : index
    %c0_1 = arith.constant 0 : index
    %0 = vector.load %arg2[%c0, %c0_0, %c0_1] : memref<1x64x32xf32, #tpu.memory_space<vmem>>, vector<1x64x32xf32>
    %1 = vector.shape_cast %0 : vector<1x64x32xf32> to vector<64x32xf32>
    %c0_2 = arith.constant 0 : index
    %c0_3 = arith.constant 0 : index
    %2 = vector.load %arg3[%c0_2, %c0_3] : memref<32x32xf32, #tpu.memory_space<vmem>>, vector<32x32xf32>
    %cst = arith.constant dense<0.000000e+00> : vector<64x32xf32>
    %3 = tpu.matmul %1, %2, %cst {dimension_numbers = #tpu.dot_dimension_numbers<[1], [0], [0], [1], [0, 0, 1, 1], [], []>} : vector<64x32xf32>, vector<32x32xf32>, vector<64x32xf32> -> vector<64x32xf32>
    %c0_4 = arith.constant 0 : index
    %c0_5 = arith.constant 0 : index
    %4 = vector.load %arg4[%c0_4, %c0_5] : memref<1x32xf32, #tpu.memory_space<vmem>>, vector<1x32xf32>
    %5 = vector.broadcast %4 : vector<1x32xf32> to vector<64x32xf32>
    %6 = arith.addf %3, %5 : vector<64x32xf32>
    %7 = vector.extract_strided_slice %6 {offsets = [0, 0], sizes = [64, 16], strides = [1, 1]} : vector<64x32xf32> to vector<64x16xf32>
    %c0_6 = arith.constant 0 : index
    %c0_7 = arith.constant 0 : index
    %c0_8 = arith.constant 0 : index
    %c0_9 = arith.constant 0 : index
    %8 = vector.load %arg5[%c0_6, %c0_7, %c0_8, %c0_9] : memref<1x2x64x16xf32, #tpu.memory_space<vmem>>, vector<1x1x64x16xf32>
    %9 = vector.shape_cast %8 : vector<1x1x64x16xf32> to vector<64x16xf32>
    %cst_10 = arith.constant dense<0.000000e+00> : vector<64x64xf32>
    %10 = tpu.matmul %7, %9, %cst_10 {dimension_numbers = #tpu.dot_dimension_numbers<[1], [1], [0], [0], [0, 0, 1, 0], [], []>} : vector<64x16xf32>, vector<64x16xf32>, vector<64x64xf32> -> vector<64x64xf32>
    %cst_11 = arith.constant 2.500000e-01 : f32
    %11 = vector.broadcast %cst_11 : f32 to vector<64x64xf32>
    %12 = arith.mulf %10, %11 : vector<64x64xf32>
    %c0_12 = arith.constant 0 : index
    %c0_13 = arith.constant 0 : index
    %c0_14 = arith.constant 0 : index
    %c0_15 = arith.constant 0 : index
    %13 = vector.load %arg9[%c0_12, %c0_13, %c0_14, %c0_15] : memref<1x2x64x64xf32, #tpu.memory_space<vmem>>, vector<1x1x64x64xf32>
    %14 = vector.shape_cast %13 : vector<1x1x64x64xf32> to vector<64x64xf32>
    %15 = vector.shape_cast %12 : vector<64x64xf32> to vector<1x1x64x64xf32>
    tpu.vector_store %arg9[%c0_12, %c0_13, %c0_14, %c0_15], %15 {strides = array<i32>} : memref<1x2x64x64xf32, #tpu.memory_space<vmem>>, vector<1x1x64x64xf32>,
    %cst_16 = arith.constant dense<0xFF800000> : vector<64xf32>
    %16 = vector.multi_reduction <maximumf>, %12, %cst_16 [1] : vector<64x64xf32> to vector<64xf32>
    %17 = vector.shape_cast %16 : vector<64xf32> to vector<64x1xf32>
    %18 = vector.broadcast %17 : vector<64x1xf32> to vector<64x64xf32>
    %19 = arith.subf %12, %18 : vector<64x64xf32>
    %20 = math.exp %19 : vector<64x64xf32>
    %cst_17 = arith.constant dense<0.000000e+00> : vector<64xf32>
    %21 = vector.multi_reduction <add>, %20, %cst_17 [1] : vector<64x64xf32> to vector<64xf32>
    %22 = vector.shape_cast %21 : vector<64xf32> to vector<64x1xf32>
    %23 = vector.broadcast %22 : vector<64x1xf32> to vector<64x64xf32>
    %24 = arith.divf %20, %23 : vector<64x64xf32>
    %c0_18 = arith.constant 0 : index
    %c0_19 = arith.constant 0 : index
    %c0_20 = arith.constant 0 : index
    %c0_21 = arith.constant 0 : index
    %25 = vector.load %arg6[%c0_18, %c0_19, %c0_20, %c0_21] : memref<1x2x64x16xf32, #tpu.memory_space<vmem>>, vector<1x1x64x16xf32>
    %26 = vector.shape_cast %25 : vector<1x1x64x16xf32> to vector<64x16xf32>
    %cst_22 = arith.constant dense<0.000000e+00> : vector<64x16xf32>
    %27 = tpu.matmul %24, %26, %cst_22 {dimension_numbers = #tpu.dot_dimension_numbers<[1], [0], [0], [1], [0, 0, 1, 1], [], []>} : vector<64x64xf32>, vector<64x16xf32>, vector<64x16xf32> -> vector<64x16xf32>
    %c0_23 = arith.constant 0 : index
    %c0_24 = arith.constant 0 : index
    %c0_25 = arith.constant 0 : index
    %28 = vector.load %arg7[%c0_23, %c0_24, %c0_25] : memref<2x16x32xf32, #tpu.memory_space<vmem>>, vector<1x16x32xf32>
    %29 = vector.shape_cast %28 : vector<1x16x32xf32> to vector<16x32xf32>
    %cst_26 = arith.constant dense<0.000000e+00> : vector<64x32xf32>
    %30 = tpu.matmul %27, %29, %cst_26 {dimension_numbers = #tpu.dot_dimension_numbers<[1], [0], [0], [1], [0, 0, 1, 1], [], []>} : vector<64x16xf32>, vector<16x32xf32>, vector<64x32xf32> -> vector<64x32xf32>
    %31 = vector.extract_strided_slice %6 {offsets = [0, 16], sizes = [64, 16], strides = [1, 1]} : vector<64x32xf32> to vector<64x16xf32>
    %c0_27 = arith.constant 0 : index
    %c1 = arith.constant 1 : index
    %c0_28 = arith.constant 0 : index
    %c0_29 = arith.constant 0 : index
    %32 = vector.load %arg5[%c0_27, %c1, %c0_28, %c0_29] : memref<1x2x64x16xf32, #tpu.memory_space<vmem>>, vector<1x1x64x16xf32>
    %33 = vector.shape_cast %32 : vector<1x1x64x16xf32> to vector<64x16xf32>
    %cst_30 = arith.constant dense<0.000000e+00> : vector<64x64xf32>
    %34 = tpu.matmul %31, %33, %cst_30 {dimension_numbers = #tpu.dot_dimension_numbers<[1], [1], [0], [0], [0, 0, 1, 0], [], []>} : vector<64x16xf32>, vector<64x16xf32>, vector<64x64xf32> -> vector<64x64xf32>
    %cst_31 = arith.constant 2.500000e-01 : f32
    %35 = vector.broadcast %cst_31 : f32 to vector<64x64xf32>
    %36 = arith.mulf %34, %35 : vector<64x64xf32>
    %c0_32 = arith.constant 0 : index
    %c1_33 = arith.constant 1 : index
    %c0_34 = arith.constant 0 : index
    %c0_35 = arith.constant 0 : index
    %37 = vector.load %arg9[%c0_32, %c1_33, %c0_34, %c0_35] : memref<1x2x64x64xf32, #tpu.memory_space<vmem>>, vector<1x1x64x64xf32>
    %38 = vector.shape_cast %37 : vector<1x1x64x64xf32> to vector<64x64xf32>
    %39 = vector.shape_cast %36 : vector<64x64xf32> to vector<1x1x64x64xf32>
    tpu.vector_store %arg9[%c0_32, %c1_33, %c0_34, %c0_35], %39 {strides = array<i32>} : memref<1x2x64x64xf32, #tpu.memory_space<vmem>>, vector<1x1x64x64xf32>,
    %cst_36 = arith.constant dense<0xFF800000> : vector<64xf32>
    %40 = vector.multi_reduction <maximumf>, %36, %cst_36 [1] : vector<64x64xf32> to vector<64xf32>
    %41 = vector.shape_cast %40 : vector<64xf32> to vector<64x1xf32>
    %42 = vector.broadcast %41 : vector<64x1xf32> to vector<64x64xf32>
    %43 = arith.subf %36, %42 : vector<64x64xf32>
    %44 = math.exp %43 : vector<64x64xf32>
    %cst_37 = arith.constant dense<0.000000e+00> : vector<64xf32>
    %45 = vector.multi_reduction <add>, %44, %cst_37 [1] : vector<64x64xf32> to vector<64xf32>
    %46 = vector.shape_cast %45 : vector<64xf32> to vector<64x1xf32>
    %47 = vector.broadcast %46 : vector<64x1xf32> to vector<64x64xf32>
    %48 = arith.divf %44, %47 : vector<64x64xf32>
    %c0_38 = arith.constant 0 : index
    %c1_39 = arith.constant 1 : index
    %c0_40 = arith.constant 0 : index
    %c0_41 = arith.constant 0 : index
    %49 = vector.load %arg6[%c0_38, %c1_39, %c0_40, %c0_41] : memref<1x2x64x16xf32, #tpu.memory_space<vmem>>, vector<1x1x64x16xf32>
    %50 = vector.shape_cast %49 : vector<1x1x64x16xf32> to vector<64x16xf32>
    %cst_42 = arith.constant dense<0.000000e+00> : vector<64x16xf32>
    %51 = tpu.matmul %48, %50, %cst_42 {dimension_numbers = #tpu.dot_dimension_numbers<[1], [0], [0], [1], [0, 0, 1, 1], [], []>} : vector<64x64xf32>, vector<64x16xf32>, vector<64x16xf32> -> vector<64x16xf32>
    %c1_43 = arith.constant 1 : index
    %c0_44 = arith.constant 0 : index
    %c0_45 = arith.constant 0 : index
    %52 = vector.load %arg7[%c1_43, %c0_44, %c0_45] : memref<2x16x32xf32, #tpu.memory_space<vmem>>, vector<1x16x32xf32>
    %53 = vector.shape_cast %52 : vector<1x16x32xf32> to vector<16x32xf32>
    %cst_46 = arith.constant dense<0.000000e+00> : vector<64x32xf32>
    %54 = tpu.matmul %51, %53, %cst_46 {dimension_numbers = #tpu.dot_dimension_numbers<[1], [0], [0], [1], [0, 0, 1, 1], [], []>} : vector<64x16xf32>, vector<16x32xf32>, vector<64x32xf32> -> vector<64x32xf32>
    %55 = arith.addf %30, %54 : vector<64x32xf32>
    %c0_47 = arith.constant 0 : index
    %c0_48 = arith.constant 0 : index
    %c0_49 = arith.constant 0 : index
    %56 = vector.load %arg8[%c0_47, %c0_48, %c0_49] : memref<1x64x32xf32, #tpu.memory_space<vmem>>, vector<1x64x32xf32>
    %57 = vector.shape_cast %56 : vector<1x64x32xf32> to vector<64x32xf32>
    %58 = vector.shape_cast %55 : vector<64x32xf32> to vector<1x64x32xf32>
    tpu.vector_store %arg8[%c0_47, %c0_48, %c0_49], %58 {strides = array<i32>} : memref<1x64x32xf32, #tpu.memory_space<vmem>>, vector<1x64x32xf32>,
    return
  }
  func.func @transform_0(%arg0: i32, %arg1: i32) -> (i32, i32, i32) {
    %c0_i32 = arith.constant 0 : i32
    %c0_i32_0 = arith.constant 0 : i32
    return %arg0, %arg1, %c0_i32 : i32, i32, i32
  }
  func.func @transform_1(%arg0: i32, %arg1: i32) -> (i32, i32) {
    %c0_i32 = arith.constant 0 : i32
    %c0_i32_0 = arith.constant 0 : i32
    %c0_i32_1 = arith.constant 0 : i32
    return %c0_i32, %c0_i32_0 : i32, i32
  }
  func.func @transform_2(%arg0: i32, %arg1: i32) -> (i32, i32) {
    %c0_i32 = arith.constant 0 : i32
    %c0_i32_0 = arith.constant 0 : i32
    %c0_i32_1 = arith.constant 0 : i32
    return %c0_i32, %c0_i32_0 : i32, i32
  }
  func.func @transform_3(%arg0: i32, %arg1: i32) -> (i32, i32, i32, i32) {
    %c0_i32 = arith.constant 0 : i32
    %c0_i32_0 = arith.constant 0 : i32
    %c0_i32_1 = arith.constant 0 : i32
    %c0_i32_2 = arith.constant 0 : i32
    return %arg0, %c0_i32, %c0_i32_0, %c0_i32_1 : i32, i32, i32, i32
  }
  func.func @transform_4(%arg0: i32, %arg1: i32) -> (i32, i32, i32, i32) {
    %c0_i32 = arith.constant 0 : i32
    %c0_i32_0 = arith.constant 0 : i32
    %c0_i32_1 = arith.constant 0 : i32
    %c0_i32_2 = arith.constant 0 : i32
    return %arg0, %c0_i32, %c0_i32_0, %c0_i32_1 : i32, i32, i32, i32
  }
  func.func @transform_5(%arg0: i32, %arg1: i32) -> (i32, i32, i32) {
    %c0_i32 = arith.constant 0 : i32
    %c0_i32_0 = arith.constant 0 : i32
    %c0_i32_1 = arith.constant 0 : i32
    %c0_i32_2 = arith.constant 0 : i32
    return %c0_i32, %c0_i32_0, %c0_i32_1 : i32, i32, i32
  }
  func.func @transform_6(%arg0: i32, %arg1: i32) -> (i32, i32, i32) {
    %c0_i32 = arith.constant 0 : i32
    %c0_i32_0 = arith.constant 0 : i32
    return %arg0, %arg1, %c0_i32 : i32, i32, i32
  }
  func.func @transform_7(%arg0: i32, %arg1: i32) -> (i32, i32, i32, i32) {
    %c0_i32 = arith.constant 0 : i32
    %c0_i32_0 = arith.constant 0 : i32
    %c0_i32_1 = arith.constant 0 : i32
    return %arg0, %c0_i32, %arg1, %c0_i32_0 : i32, i32, i32, i32
  }
}

</mosaic_0001>

<llo_original>
// kernel: tpu_custom_call.1
$region0: #{tpu_custom_call.1}
  #allocation0 [shape = 'u32[]', space=smem, size = 0x4, offset = 0x4, fixed_abs, tag = 'smem constant byte address 0x4 - core index']
  #allocation1 [shape = 'u32[144,128]{1,0:T(1,128)}', space=vmem, size = 0x12000, scoped, tag = 'internal scratch']
  %s0 = inlined_call_operand.vmem [shape: f32[2,64,32], index: 0, kind: input, shape index: {}]
  %s1 = inlined_call_operand.vmem [shape: f32[32,32], index: 1, kind: input, shape index: {}]
  %s2 = inlined_call_operand.vmem [shape: f32[1,32], index: 2, kind: input, shape index: {}]
  %s3 = inlined_call_operand.vmem [shape: f32[2,2,64,16], index: 3, kind: input, shape index: {}]
  %s4 = inlined_call_operand.vmem [shape: f32[2,2,64,16], index: 4, kind: input, shape index: {}]
  %s5 = inlined_call_operand.vmem [shape: f32[2,16,32], index: 5, kind: input, shape index: {}]
  %s6 = inlined_call_operand.vmem [shape: f32[2,64,32], index: 6, kind: output, shape index: {0}]
  %s7 = inlined_call_operand.hbm [shape: f32[2,2,64,64], index: 7, kind: output, shape index: {1}]
  %8 = xla_tuple %s6, %s7
  %s9 = sld [smem:[#allocation0]]
  $region65: #{tpu_custom_call.1} parent=0
    _
  %s11 = ssub.s32 1, %s9
  %s12 = scalar_select 0, %s11, %s9
  $region1: #{tpu_custom_call.1} parent=0
    #allocation2 [shape = 'u8[131072]{0}', space=vmem, size = 0x20000, scoped, tag = 'output window, operand 1']
    #allocation3 [shape = 's32[2]{0}', space=sflag, size = 0x8, scoped, tag = 'scoped memory for tpu_custom_call.1']
    %13 = vsyncpa [#allocation3], 0
    %s14 = scalar_lea.sflag [#allocation3], 1
    %15 = vsyncpa %s14, 0
    loop: start=0, step=1, limit=4
    $region2: #{tpu_custom_call.1} parent=1 // loop_pre_header
      _
    $region3: #{tpu_custom_call.1} parent=1 // loop_header
      %s17 = sphi 0, %s21
      %p18 = scmp.ge.s32.totalorder %s17, 4
      %s24 = sphi 0, %s36
      %s25 = sphi 0, %s32
      %s26 = sphi 0, %s24
      %s27 = sphi 0, %s25
      %s28 = sphi 0, %s26
      %s29 = sphi 0, %s27
      %s41 = sphi 0, %s43
      %s44 = sphi 0, %s41
      %s45 = sphi 0, %s44
      %s61 = sphi 0, %s45
      %s65 = sphi 0, %s65
      %s67 = sphi 0, %s65
      %s68 = sphi 0, %s67
      %s82 = sphi 0, %s68
      %s86 = sphi 0, %s86
      %s88 = sphi 0, %s86
      %s89 = sphi 0, %s88
      %s103 = sphi 0, %s89
      %s109 = sphi 0, %s111
      %s112 = sphi 0, %s109
      %s113 = sphi 0, %s112
      %s129 = sphi 0, %s113
      %s135 = sphi 0, %s137
      %s138 = sphi 0, %s135
      %s139 = sphi 0, %s138
      %s155 = sphi 0, %s139
      %s159 = sphi 0, %s159
      %s161 = sphi 0, %s159
      %s162 = sphi 0, %s161
      %s176 = sphi 0, %s162
      %s184 = sphi 0, %s186
      %s187 = sphi 0, %s184
      %s188 = sphi 0, %s187
      %s204 = sphi 0, %s188
      %s212 = sphi 0, %s214
      %s215 = sphi 0, %s212
      %s216 = sphi 0, %s215
      %s232 = sphi 0, %s216
    $region4: #{tpu_custom_call.1} parent=1 // loop_header_branch
      %20 = sbr.rel (%p18) target = $region8
    $region5: #{tpu_custom_call.1} parent=1 // loop_body
      %s22 = ssub.s32 %s17, 1
      %s23 = ssub.s32 %s17, 2
      %s30 = sadd.s32 1, %s25
      %p31 = scmp.ge.s32.totalorder %s30, 1
      %s32 = scalar_select %p31, 0, %s30
      %s33 = sadd.s32 1, %s24
      %s34 = scalar_select %p31, %s33, %s24
      %p35 = scmp.ge.s32.totalorder %s34, 2
      %s36 = scalar_select %p35, 0, %s34
      %s37 = ssub.s32 %s24, %s36
      %s38 = ssub.s32 %s25, %s32
      %s39 = sor.u32 %s37, %s38
      %p40 = scmp.eq.s32.totalorder %s39, 0
      %s42 = sadd.s32 %s41, 1
      %s43 = scalar_select %p40, %s41, %s42
      %p46 = pneg %p40
      %p47 = scmp.eq.s32.totalorder %s17, 1
      %p48 = por %p46, %p47
      %p49 = scmp.ne.s32.totalorder %s41, %s44
      %p50 = scmp.eq.s32.totalorder %s17, 0
      %p51 = por %p49, %p50
      %p52 = scmp.ne.s32.totalorder %s41, %s44
      %p53 = scmp.eq.s32.totalorder %s22, 1
      %p54 = por %p52, %p53
      %p55 = scmp.ne.s32.totalorder %s44, %s45
      %p56 = scmp.eq.s32.totalorder %s22, 0
      %p57 = por %p55, %p56
      %p58 = scmp.ne.s32.totalorder %s44, %s45
      %p59 = scmp.eq.s32.totalorder %s23, 1
      %p60 = por %p58, %p59
      %p62 = scmp.ne.s32.totalorder %s45, %s61
      %p63 = scmp.eq.s32.totalorder %s23, 0
      %p64 = por %p62, %p63
      %s66 = sadd.s32 %s65, 1
      %p69 = scmp.eq.s32.totalorder %s17, 1
      %p70 = scmp.ne.s32.totalorder %s65, %s67
      %p71 = scmp.eq.s32.totalorder %s17, 0
      %p72 = por %p70, %p71
      %p73 = scmp.ne.s32.totalorder %s65, %s67
      %p74 = scmp.eq.s32.totalorder %s22, 1
      %p75 = por %p73, %p74
      %p76 = scmp.ne.s32.totalorder %s67, %s68
      %p77 = scmp.eq.s32.totalorder %s22, 0
      %p78 = por %p76, %p77
      %p79 = scmp.ne.s32.totalorder %s67, %s68
      %p80 = scmp.eq.s32.totalorder %s23, 1
      %p81 = por %p79, %p80
      %p83 = scmp.ne.s32.totalorder %s68, %s82
      %p84 = scmp.eq.s32.totalorder %s23, 0
      %p85 = por %p83, %p84
      %s87 = sadd.s32 %s86, 1
      %p90 = scmp.eq.s32.totalorder %s17, 1
      %p91 = scmp.ne.s32.totalorder %s86, %s88
      %p92 = scmp.eq.s32.totalorder %s17, 0
      %p93 = por %p91, %p92
      %p94 = scmp.ne.s32.totalorder %s86, %s88
      %p95 = scmp.eq.s32.totalorder %s22, 1
      %p96 = por %p94, %p95
      %p97 = scmp.ne.s32.totalorder %s88, %s89
      %p98 = scmp.eq.s32.totalorder %s22, 0
      %p99 = por %p97, %p98
      %p100 = scmp.ne.s32.totalorder %s88, %s89
      %p101 = scmp.eq.s32.totalorder %s23, 1
      %p102 = por %p100, %p101
      %p104 = scmp.ne.s32.totalorder %s89, %s103
      %p105 = scmp.eq.s32.totalorder %s23, 0
      %p106 = por %p104, %p105
      %s107 = ssub.s32 %s24, %s36
      %p108 = scmp.eq.s32.totalorder %s107, 0
      %s110 = sadd.s32 %s109, 1
      %s111 = scalar_select %p108, %s109, %s110
      %p114 = pneg %p108
      %p115 = scmp.eq.s32.totalorder %s17, 1
      %p116 = por %p114, %p115
      %p117 = scmp.ne.s32.totalorder %s109, %s112
      %p118 = scmp.eq.s32.totalorder %s17, 0
      %p119 = por %p117, %p118
      %p120 = scmp.ne.s32.totalorder %s109, %s112
      %p121 = scmp.eq.s32.totalorder %s22, 1
      %p122 = por %p120, %p121
      %p123 = scmp.ne.s32.totalorder %s112, %s113
      %p124 = scmp.eq.s32.totalorder %s22, 0
      %p125 = por %p123, %p124
      %p126 = scmp.ne.s32.totalorder %s112, %s113
      %p127 = scmp.eq.s32.totalorder %s23, 1
      %p128 = por %p126, %p127
      %p130 = scmp.ne.s32.totalorder %s113, %s129
      %p131 = scmp.eq.s32.totalorder %s23, 0
      %p132 = por %p130, %p131
      %s133 = ssub.s32 %s24, %s36
      %p134 = scmp.eq.s32.totalorder %s133, 0
      %s136 = sadd.s32 %s135, 1
      %s137 = scalar_select %p134, %s135, %s136
      %p140 = pneg %p134
      %p141 = scmp.eq.s32.totalorder %s17, 1
      %p142 = por %p140, %p141
      %p143 = scmp.ne.s32.totalorder %s135, %s138
      %p144 = scmp.eq.s32.totalorder %s17, 0
      %p145 = por %p143, %p144
      %p146 = scmp.ne.s32.totalorder %s135, %s138
      %p147 = scmp.eq.s32.totalorder %s22, 1
      %p148 = por %p146, %p147
      %p149 = scmp.ne.s32.totalorder %s138, %s139
      %p150 = scmp.eq.s32.totalorder %s22, 0
      %p151 = por %p149, %p150
      %p152 = scmp.ne.s32.totalorder %s138, %s139
      %p153 = scmp.eq.s32.totalorder %s23, 1
      %p154 = por %p152, %p153
      %p156 = scmp.ne.s32.totalorder %s139, %s155
      %p157 = scmp.eq.s32.totalorder %s23, 0
      %p158 = por %p156, %p157
      %s160 = sadd.s32 %s159, 1
      %p163 = scmp.eq.s32.totalorder %s17, 1
      %p164 = scmp.ne.s32.totalorder %s159, %s161
      %p165 = scmp.eq.s32.totalorder %s17, 0
      %p166 = por %p164, %p165
      %p167 = scmp.ne.s32.totalorder %s159, %s161
      %p168 = scmp.eq.s32.totalorder %s22, 1
      %p169 = por %p167, %p168
      %p170 = scmp.ne.s32.totalorder %s161, %s162
      %p171 = scmp.eq.s32.totalorder %s22, 0
      %p172 = por %p170, %p171
      %p173 = scmp.ne.s32.totalorder %s161, %s162
      %p174 = scmp.eq.s32.totalorder %s23, 1
      %p175 = por %p173, %p174
      %p177 = scmp.ne.s32.totalorder %s162, %s176
      %p178 = scmp.eq.s32.totalorder %s23, 0
      %p179 = por %p177, %p178
      %s180 = ssub.s32 %s24, %s36
      %s181 = ssub.s32 %s25, %s32
      %s182 = sor.u32 %s180, %s181
      %p183 = scmp.eq.s32.totalorder %s182, 0
      %s185 = sadd.s32 %s184, 1
      %s186 = scalar_select %p183, %s184, %s185
      %p189 = pneg %p183
      %p190 = scmp.eq.s32.totalorder %s17, 1
      %p191 = por %p189, %p190
      %p192 = scmp.ne.s32.totalorder %s184, %s187
      %p193 = scmp.eq.s32.totalorder %s17, 0
      %p194 = por %p192, %p193
      %p195 = scmp.ne.s32.totalorder %s184, %s187
      %p196 = scmp.eq.s32.totalorder %s22, 1
      %p197 = por %p195, %p196
      %p198 = scmp.ne.s32.totalorder %s187, %s188
      %p199 = scmp.eq.s32.totalorder %s22, 0
      %p200 = por %p198, %p199
      %p201 = scmp.ne.s32.totalorder %s187, %s188
      %p202 = scmp.eq.s32.totalorder %s23, 1
      %p203 = por %p201, %p202
      %p205 = scmp.ne.s32.totalorder %s188, %s204
      %p206 = scmp.eq.s32.totalorder %s23, 0
      %p207 = por %p205, %p206
      %s208 = ssub.s32 %s24, %s36
      %s209 = ssub.s32 %s25, %s32
      %s210 = sor.u32 %s208, %s209
      %p211 = scmp.eq.s32.totalorder %s210, 0
      %s213 = sadd.s32 %s212, 1
      %s214 = scalar_select %p211, %s212, %s213
      %p217 = pneg %p211
      %p218 = scmp.eq.s32.totalorder %s17, 1
      %p219 = por %p217, %p218
      %p220 = scmp.ne.s32.totalorder %s212, %s215
      %p221 = scmp.eq.s32.totalorder %s17, 0
      %p222 = por %p220, %p221
      %p223 = scmp.ne.s32.totalorder %s212, %s215
      %p224 = scmp.eq.s32.totalorder %s22, 1
      %p225 = por %p223, %p224
      %p226 = scmp.ne.s32.totalorder %s215, %s216
      %p227 = scmp.eq.s32.totalorder %s22, 0
      %p228 = por %p226, %p227
      %p229 = scmp.ne.s32.totalorder %s215, %s216
      %p230 = scmp.eq.s32.totalorder %s23, 1
      %p231 = por %p229, %p230
      %p233 = scmp.ne.s32.totalorder %s216, %s232
      %p234 = scmp.eq.s32.totalorder %s23, 0
      %p235 = por %p233, %p234
      %p236 = scmp.le.s32.totalorder 1, %s17
      %p237 = scmp.lt.s32.totalorder %s17, 3
      %p238 = pnand %p236, %p237
      %p239 = pneg %p238
      // Predicated region
      $region9: #{tpu_custom_call.1} parent=5 // pred_check
        _
      $region10: #{tpu_custom_call.1} parent=5 // pred_check_branch
        %241 = sbr.rel (%p238) target = $region12
      $region11: #{tpu_custom_call.1} parent=5 // pred_region
        %s242 = ssub.s32 %s17, 1
        // Predicated region
        $region13: #{tpu_custom_call.1} parent=11 // pred_check
          %p243 = pneg %p78
        $region14: #{tpu_custom_call.1} parent=11 // pred_check_branch
          %245 = sbr.rel (%p243) target = $region16
        $region15: #{tpu_custom_call.1} parent=11 // pred_region
          _
        $region16: #{tpu_custom_call.1} parent=11 // pred_fallthru
          _
        // Predicated region
        $region17: #{tpu_custom_call.1} parent=11 // pred_check
          %p246 = pneg %p99
        $region18: #{tpu_custom_call.1} parent=11 // pred_check_branch
          %248 = sbr.rel (%p246) target = $region20
        $region19: #{tpu_custom_call.1} parent=11 // pred_region
          _
        $region20: #{tpu_custom_call.1} parent=11 // pred_fallthru
          _
        // Predicated region
        $region21: #{tpu_custom_call.1} parent=11 // pred_check
          %p249 = pneg %p172
        $region22: #{tpu_custom_call.1} parent=11 // pred_check_branch
          %251 = sbr.rel (%p249) target = $region24
        $region23: #{tpu_custom_call.1} parent=11 // pred_region
          _
        $region24: #{tpu_custom_call.1} parent=11 // pred_fallthru
          _
      $region12: #{tpu_custom_call.1} parent=5 // pred_fallthru
        _
      %p252 = scmp.lt.s32.totalorder %s17, 2
      // Predicated region
      $region25: #{tpu_custom_call.1} parent=5 // pred_check
        %p253 = pneg %p252
      $region26: #{tpu_custom_call.1} parent=5 // pred_check_branch
        %255 = sbr.rel (%p253) target = $region28
      $region27: #{tpu_custom_call.1} parent=5 // pred_region
        // Predicated region
        $region29: #{tpu_custom_call.1} parent=27 // pred_check
          %p256 = pneg %p51
        $region30: #{tpu_custom_call.1} parent=27 // pred_check_branch
          %258 = sbr.rel (%p256) target = $region32
        $region31: #{tpu_custom_call.1} parent=27 // pred_region
          %s259 = smul.u32 8, %s25
          %p260 = scmp.lt.s32.totalorder %s24, 1
          %s261 = scalar_select %p260, %s24, 1
          %p262 = scmp.lt.s32.totalorder %s259, 7
          %s263 = scalar_select %p262, %s259, 7
          %s264 = smul.addr %s261, 8
          %s265 = sadd.s32 %s263, %s264
          %s266 = smul.addr %s265, 8
          %s267 = scalar_lea.vmem %s0, %s266
          %s268 = smul.u32 8, %s25
        $region32: #{tpu_custom_call.1} parent=27 // pred_fallthru
          _
        // Predicated region
        $region33: #{tpu_custom_call.1} parent=27 // pred_check
          %p269 = pneg %p119
        $region34: #{tpu_custom_call.1} parent=27 // pred_check_branch
          %271 = sbr.rel (%p269) target = $region36
        $region35: #{tpu_custom_call.1} parent=27 // pred_region
          %p272 = scmp.lt.s32.totalorder %s24, 1
          %s273 = scalar_select %p272, %s24, 1
          %s274 = smul.addr %s273, 16
          %s275 = smul.addr %s274, 8
          %s276 = scalar_lea.vmem %s3, %s275
        $region36: #{tpu_custom_call.1} parent=27 // pred_fallthru
          _
        // Predicated region
        $region37: #{tpu_custom_call.1} parent=27 // pred_check
          %p277 = pneg %p145
        $region38: #{tpu_custom_call.1} parent=27 // pred_check_branch
          %279 = sbr.rel (%p277) target = $region40
        $region39: #{tpu_custom_call.1} parent=27 // pred_region
          %p280 = scmp.lt.s32.totalorder %s24, 1
          %s281 = scalar_select %p280, %s24, 1
          %s282 = smul.addr %s281, 16
          %s283 = smul.addr %s282, 8
          %s284 = scalar_lea.vmem %s4, %s283
        $region40: #{tpu_custom_call.1} parent=27 // pred_fallthru
          _
      $region28: #{tpu_custom_call.1} parent=5 // pred_fallthru
        _
      %p285 = scmp.le.s32.totalorder 1, %s17
      %p286 = scmp.lt.s32.totalorder %s17, 3
      %p287 = pnand %p285, %p286
      %p288 = pneg %p287
      // Predicated region
      $region41: #{tpu_custom_call.1} parent=5 // pred_check
        _
      $region42: #{tpu_custom_call.1} parent=5 // pred_check_branch
        %290 = sbr.rel (%p287) target = $region44
      $region43: #{tpu_custom_call.1} parent=5 // pred_region
        %s291 = ssub.s32 %s17, 1
        %s292 = smul.u32 8, %s27
        %p293 = scmp.lt.s32.totalorder %s26, 1
        %s294 = scalar_select %p293, %s26, 1
        %p295 = scmp.lt.s32.totalorder %s292, 7
        %s296 = scalar_select %p295, %s292, 7
        %s297 = smul.addr %s294, 8
        %s298 = sadd.s32 %s296, %s297
        %s299 = smul.addr %s298, 8
        %s300 = scalar_lea.vmem %s0, %s299
        %p301 = pneg %p57
        %p302 = pneg %p54
        %p303 = pneg %p78
        %p304 = pneg %p75
        %p305 = pneg %p99
        %p306 = pneg %p96
        %p307 = scmp.lt.s32.totalorder %s26, 1
        %s308 = scalar_select %p307, %s26, 1
        %s309 = smul.addr %s308, 16
        %s310 = smul.addr %s309, 8
        %s311 = scalar_lea.vmem %s3, %s310
        %p312 = pneg %p125
        %p313 = pneg %p122
        %p314 = scmp.lt.s32.totalorder %s26, 1
        %s315 = scalar_select %p314, %s26, 1
        %s316 = smul.addr %s315, 16
        %s317 = smul.addr %s316, 8
        %s318 = scalar_lea.vmem %s4, %s317
        %p319 = pneg %p151
        %p320 = pneg %p148
        %p321 = pneg %p172
        %p322 = pneg %p169
        %p323 = pneg %p200
        %p324 = pneg %p197
        %s325 = smul.u32 8, %s27
        %p326 = scmp.lt.s32.totalorder %s26, 1
        %s327 = scalar_select %p326, %s26, 1
        %p328 = scmp.lt.s32.totalorder %s325, 7
        %s329 = scalar_select %p328, %s325, 7
        %s330 = smul.addr %s327, 8
        %s331 = sadd.s32 %s329, %s330
        %s332 = smul.addr %s331, 8
        %s333 = scalar_lea.vmem %s6, %s332
        %p334 = pneg %p228
        %p335 = pneg %p225
        %s336 = sand.u32 %s215, 1
        %s337 = scalar_lea.sflag [#allocation3], %s336
        %s338 = sand.u32 %s215, 1
        %s339 = smul.addr %s338, 128
        %s340 = scalar_lea.vmem [#allocation2], %s339
        %s341 = smul.u32 8, %s27
        %p342 = scmp.lt.s32.totalorder %s26, 1
        %s343 = scalar_select %p342, %s26, 1
        %p344 = scmp.lt.s32.totalorder %s341, 7
        %s345 = scalar_select %p344, %s341, 7
        %s346 = smul.addr %s343, 8
        %s347 = sadd.s32 %s345, %s346
        %s348 = smul.addr %s347, 8
        %s349 = scalar_lea.vmem %s0, %s348
        %s350 = smul.u32 8, %s27
        %p351 = scmp.lt.s32.totalorder %s26, 1
        %s352 = scalar_select %p351, %s26, 1
        %s353 = smul.addr %s352, 16
        %s354 = smul.addr %s353, 8
        %s355 = scalar_lea.vmem %s3, %s354
        %p356 = scmp.lt.s32.totalorder %s26, 1
        %s357 = scalar_select %p356, %s26, 1
        %s358 = smul.addr %s357, 16
        %s359 = smul.addr %s358, 8
        %s360 = scalar_lea.vmem %s4, %s359
        %s361 = smul.u32 8, %s27
        %p362 = scmp.lt.s32.totalorder %s26, 1
        %s363 = scalar_select %p362, %s26, 1
        %p364 = scmp.lt.s32.totalorder %s361, 7
        %s365 = scalar_select %p364, %s361, 7
        %s366 = smul.addr %s363, 8
        %s367 = sadd.s32 %s365, %s366
        %s368 = smul.addr %s367, 8
        %s369 = scalar_lea.vmem %s6, %s368
        %s370 = smul.u32 8, %s27
        %s371 = smul.u32 8, %s27
        %v372 = vld [vmem:[%s349] sm:$0xff]
        %v373 = vld [vmem:[%s349 + $0x8] sm:$0xff]
        %v374 = vld [vmem:[%s349 + $0x10] sm:$0xff]
        %v375 = vld [vmem:[%s349 + $0x18] sm:$0xff]
        %v376 = vld [vmem:[%s349 + $0x20] sm:$0xff]
        %v377 = vld [vmem:[%s349 + $0x28] sm:$0xff]
        %v378 = vld [vmem:[%s349 + $0x30] sm:$0xff]
        %v379 = vld [vmem:[%s349 + $0x38] sm:$0xff]
        %v380 = vld [vmem:[%s1] sm:$0xff]
        %v381 = vld [vmem:[%s1 + $0x8] sm:$0xff]
        %v382 = vld [vmem:[%s1 + $0x10] sm:$0xff]
        %v383 = vld [vmem:[%s1 + $0x18] sm:$0xff]
        %v384 = vld [vmem:[%s2] sm:$0x1]
        %v386 = vlaneseq
        %v387 = vshrl.u32 %v386, 7
        %v388 = vsub.s32 0, %v387
        %v389 = vrot.slane %v384, %v388
        %vm391 = vcmask 261120
        %v393 = vsel %vm391, %v372, 0
        %v396 = vsel %vm391, %v373, 0
        %v399 = vsel %vm391, %v374, 0
        %v402 = vsel %vm391, %v375, 0
        %v405 = vsel %vm391, %v376, 0
        %v408 = vsel %vm391, %v377, 0
        %v411 = vsel %vm391, %v378, 0
        %v414 = vsel %vm391, %v379, 0
        %416 = vmatprep.subr.mxu0 0.0
        %417 = vmatpush1.msra.mxu0 0.0
        %418 = vmatprep.subr.mxu0 0.0
        %419 = vmatpush1.msra.mxu0 0.0
        %420 = vmatprep.subr.mxu0 0.0
        %421 = vmatpush1.msra.mxu0 0.0
        %422 = vmatprep.subr.mxu0 0.0
        %423 = vmatpush1.msra.mxu0 0.0
        %424 = vmatprep.subr.mxu0 0.0
        %425 = vmatpush1.msra.mxu0 0.0
        %426 = vmatprep.subr.mxu0 0.0
        %427 = vmatpush1.msra.mxu0 0.0
        %428 = vmatprep.subr.mxu0 0.0
        %429 = vmatpush1.msra.mxu0 0.0
        %430 = vmatprep.subr.mxu0 0.0
        %431 = vmatpush1.msra.mxu0 0.0
        %432 = vmatprep.subr.mxu0 0.0
        %433 = vmatpush1.msra.mxu0 0.0
        %434 = vmatprep.subr.mxu0 0.0
        %435 = vmatpush1.msra.mxu0 0.0
        %436 = vmatprep.subr.mxu0 0.0
        %437 = vmatpush1.msra.mxu0 0.0
        %438 = vmatprep.subr.mxu0 0.0
        %439 = vmatpush1.msra.mxu0 0.0
        %440 = vmatprep.subr.mxu0 0.0
        %441 = vmatpush1.msra.mxu0 %v383
        %442 = vmatprep.subr.mxu0 0.0
        %443 = vmatpush1.msra.mxu0 %v382
        %444 = vmatprep.subr.mxu0 0.0
        %445 = vmatpush1.msra.mxu0 %v381
        %446 = vmatprep.subr.mxu0 0.0
        %447 = vmatpush1.msra.mxu0 %v380
        %448 = vmatprep.subr.mxu0 0.0
        %449 = vmatpush2.msra.mxu0 0.0
        %450 = vmatprep.subr.mxu0 0.0
        %451 = vmatpush2.msra.mxu0 0.0
        %452 = vmatprep.subr.mxu0 0.0
        %453 = vmatpush2.msra.mxu0 0.0
        %454 = vmatprep.subr.mxu0 0.0
        %455 = vmatpush2.msra.mxu0 0.0
        %456 = vmatprep.subr.mxu0 0.0
        %457 = vmatpush2.msra.mxu0 0.0
        %458 = vmatprep.subr.mxu0 0.0
        %459 = vmatpush2.msra.mxu0 0.0
        %460 = vmatprep.subr.mxu0 0.0
        %461 = vmatpush2.msra.mxu0 0.0
        %462 = vmatprep.subr.mxu0 0.0
        %463 = vmatpush2.msra.mxu0 0.0
        %464 = vmatprep.subr.mxu0 0.0
        %465 = vmatpush2.msra.mxu0 0.0
        %466 = vmatprep.subr.mxu0 0.0
        %467 = vmatpush2.msra.mxu0 0.0
        %468 = vmatprep.subr.mxu0 0.0
        %469 = vmatpush2.msra.mxu0 0.0
        %470 = vmatprep.subr.mxu0 0.0
        %471 = vmatpush2.msra.mxu0 0.0
        %472 = vmatprep.subr.mxu0 0.0
        %473 = vmatpush2.msra.mxu0 0.0
        %474 = vmatprep.subr.mxu0 0.0
        %475 = vmatpush2.msra.mxu0 0.0
        %476 = vmatprep.subr.mxu0 0.0
        %477 = vmatpush2.msra.mxu0 0.0
        %478 = vmatprep.subr.mxu0 0.0
        %479 = vmatpush2.msra.mxu0 0.0
        %480 = vmatprep.mubr.f32.mxu0 0.0
        %481 = vmatmul.mubr.f32.gmra.mxu0 %v393
        %v482 = vpop.f32.mrf.mxu0
        %v483 = vadd.f32 %v389, %v482
        %v484 = vpop.f32.mrf.mxu0
        %485 = vmatprep.mubr.f32.mxu0 0.0
        %486 = vmatmul.mubr.f32.gmra.mxu0 %v396
        %v487 = vpop.f32.mrf.mxu0
        %v488 = vadd.f32 %v389, %v487
        %v489 = vpop.f32.mrf.mxu0
        %490 = vmatprep.mubr.f32.mxu0 0.0
        %491 = vmatmul.mubr.f32.gmra.mxu0 %v399
        %v492 = vpop.f32.mrf.mxu0
        %v493 = vadd.f32 %v389, %v492
        %v494 = vpop.f32.mrf.mxu0
        %495 = vmatprep.mubr.f32.mxu0 0.0
        %496 = vmatmul.mubr.f32.gmra.mxu0 %v402
        %v497 = vpop.f32.mrf.mxu0
        %v498 = vadd.f32 %v389, %v497
        %v499 = vpop.f32.mrf.mxu0
        %500 = vmatprep.mubr.f32.mxu0 0.0
        %501 = vmatmul.mubr.f32.gmra.mxu0 %v405
        %v502 = vpop.f32.mrf.mxu0
        %v503 = vadd.f32 %v389, %v502
        %v504 = vpop.f32.mrf.mxu0
        %505 = vmatprep.mubr.f32.mxu0 0.0
        %506 = vmatmul.mubr.f32.gmra.mxu0 %v408
        %v507 = vpop.f32.mrf.mxu0
        %v508 = vadd.f32 %v389, %v507
        %v509 = vpop.f32.mrf.mxu0
        %510 = vmatprep.mubr.f32.mxu0 0.0
        %511 = vmatmul.mubr.f32.gmra.mxu0 %v411
        %v512 = vpop.f32.mrf.mxu0
        %v513 = vadd.f32 %v389, %v512
        %v514 = vpop.f32.mrf.mxu0
        %515 = vmatprep.mubr.f32.mxu0 0.0
        %516 = vmatmul.mubr.f32.gmra.mxu0 %v414
        %v517 = vpop.f32.mrf.mxu0
        %v518 = vadd.f32 %v389, %v517
        %v519 = vpop.f32.mrf.mxu0
        %520 = vdwg.mxu0
        %v521 = vld [vmem:[%s355] sm:$0xff]
        %v522 = vld [vmem:[%s355 + $0x8] sm:$0xff]
        %v523 = vld [vmem:[%s355 + $0x10] sm:$0xff]
        %v524 = vld [vmem:[%s355 + $0x18] sm:$0xff]
        %v525 = vld [vmem:[%s355 + $0x20] sm:$0xff]
        %v526 = vld [vmem:[%s355 + $0x28] sm:$0xff]
        %v527 = vld [vmem:[%s355 + $0x30] sm:$0xff]
        %v528 = vld [vmem:[%s355 + $0x38] sm:$0xff]
        %vm529 = vcmask 130048
        %v531 = vsel %vm529, %v483, 0
        %v534 = vsel %vm529, %v488, 0
        %v537 = vsel %vm529, %v493, 0
        %v540 = vsel %vm529, %v498, 0
        %v543 = vsel %vm529, %v503, 0
        %v546 = vsel %vm529, %v508, 0
        %v549 = vsel %vm529, %v513, 0
        %v552 = vsel %vm529, %v518, 0
        %v555 = vsel %vm529, %v521, 0
        %v558 = vsel %vm529, %v522, 0
        %v561 = vsel %vm529, %v523, 0
        %v564 = vsel %vm529, %v524, 0
        %v567 = vsel %vm529, %v525, 0
        %v570 = vsel %vm529, %v526, 0
        %v573 = vsel %vm529, %v527, 0
        %v576 = vsel %vm529, %v528, 0
        %578 = vmatprep.subr.mxu0 0.0
        %579 = vmatpush1.xpose.msra.mxu0 0.0
        %580 = vmatprep.subr.mxu0 0.0
        %581 = vmatpush1.xpose.msra.mxu0 0.0
        %582 = vmatprep.subr.mxu0 0.0
        %583 = vmatpush1.xpose.msra.mxu0 0.0
        %584 = vmatprep.subr.mxu0 0.0
        %585 = vmatpush1.xpose.msra.mxu0 0.0
        %586 = vmatprep.subr.mxu0 0.0
        %587 = vmatpush1.xpose.msra.mxu0 0.0
        %588 = vmatprep.subr.mxu0 0.0
        %589 = vmatpush1.xpose.msra.mxu0 0.0
        %590 = vmatprep.subr.mxu0 0.0
        %591 = vmatpush1.xpose.msra.mxu0 0.0
        %592 = vmatprep.subr.mxu0 0.0
        %593 = vmatpush1.xpose.msra.mxu0 0.0
        %594 = vmatprep.subr.mxu0 0.0
        %595 = vmatpush1.xpose.msra.mxu0 %v576
        %596 = vmatprep.subr.mxu0 0.0
        %597 = vmatpush1.xpose.msra.mxu0 %v573
        %598 = vmatprep.subr.mxu0 0.0
        %599 = vmatpush1.xpose.msra.mxu0 %v570
        %600 = vmatprep.subr.mxu0 0.0
        %601 = vmatpush1.xpose.msra.mxu0 %v567
        %602 = vmatprep.subr.mxu0 0.0
        %603 = vmatpush1.xpose.msra.mxu0 %v564
        %604 = vmatprep.subr.mxu0 0.0
        %605 = vmatpush1.xpose.msra.mxu0 %v561
        %606 = vmatprep.subr.mxu0 0.0
        %607 = vmatpush1.xpose.msra.mxu0 %v558
        %608 = vmatprep.subr.mxu0 0.0
        %609 = vmatpush1.xpose.msra.mxu0 %v555
        %610 = vmatprep.subr.mxu0 0.0
        %611 = vmatpush2.xpose.msra.mxu0 0.0
        %612 = vmatprep.subr.mxu0 0.0
        %613 = vmatpush2.xpose.msra.mxu0 0.0
        %614 = vmatprep.subr.mxu0 0.0
        %615 = vmatpush2.xpose.msra.mxu0 0.0
        %616 = vmatprep.subr.mxu0 0.0
        %617 = vmatpush2.xpose.msra.mxu0 0.0
        %618 = vmatprep.subr.mxu0 0.0
        %619 = vmatpush2.xpose.msra.mxu0 0.0
        %620 = vmatprep.subr.mxu0 0.0
        %621 = vmatpush2.xpose.msra.mxu0 0.0
        %622 = vmatprep.subr.mxu0 0.0
        %623 = vmatpush2.xpose.msra.mxu0 0.0
        %624 = vmatprep.subr.mxu0 0.0
        %625 = vmatpush2.xpose.msra.mxu0 0.0
        %626 = vmatprep.subr.mxu0 0.0
        %627 = vmatpush2.xpose.msra.mxu0 0.0
        %628 = vmatprep.subr.mxu0 0.0
        %629 = vmatpush2.xpose.msra.mxu0 0.0
        %630 = vmatprep.subr.mxu0 0.0
        %631 = vmatpush2.xpose.msra.mxu0 0.0
        %632 = vmatprep.subr.mxu0 0.0
        %633 = vmatpush2.xpose.msra.mxu0 0.0
        %634 = vmatprep.subr.mxu0 0.0
        %635 = vmatpush2.xpose.msra.mxu0 0.0
        %636 = vmatprep.subr.mxu0 0.0
        %637 = vmatpush2.xpose.msra.mxu0 0.0
        %638 = vmatprep.subr.mxu0 0.0
        %639 = vmatpush2.xpose.msra.mxu0 0.0
        %640 = vmatprep.subr.mxu0 0.0
        %641 = vmatpush2.xpose.msra.mxu0 0.0
        %642 = vmatprep.mubr.f32.mxu0 0.0
        %643 = vmatmul.mubr.f32.gmra.mxu0 %v531
        %v644 = vpop.f32.mrf.mxu0
        %v645 = vadd.f32 0.0, %v644
        %v646 = vpop.f32.mrf.mxu0
        %647 = vmatprep.mubr.f32.mxu0 0.0
        %648 = vmatmul.mubr.f32.gmra.mxu0 %v534
        %v649 = vpop.f32.mrf.mxu0
        %v650 = vadd.f32 0.0, %v649
        %v651 = vpop.f32.mrf.mxu0
        %652 = vmatprep.mubr.f32.mxu0 0.0
        %653 = vmatmul.mubr.f32.gmra.mxu0 %v537
        %v654 = vpop.f32.mrf.mxu0
        %v655 = vadd.f32 0.0, %v654
        %v656 = vpop.f32.mrf.mxu0
        %657 = vmatprep.mubr.f32.mxu0 0.0
        %658 = vmatmul.mubr.f32.gmra.mxu0 %v540
        %v659 = vpop.f32.mrf.mxu0
        %v660 = vadd.f32 0.0, %v659
        %v661 = vpop.f32.mrf.mxu0
        %662 = vmatprep.mubr.f32.mxu0 0.0
        %663 = vmatmul.mubr.f32.gmra.mxu0 %v543
        %v664 = vpop.f32.mrf.mxu0
        %v665 = vadd.f32 0.0, %v664
        %v666 = vpop.f32.mrf.mxu0
        %667 = vmatprep.mubr.f32.mxu0 0.0
        %668 = vmatmul.mubr.f32.gmra.mxu0 %v546
        %v669 = vpop.f32.mrf.mxu0
        %v670 = vadd.f32 0.0, %v669
        %v671 = vpop.f32.mrf.mxu0
        %672 = vmatprep.mubr.f32.mxu0 0.0
        %673 = vmatmul.mubr.f32.gmra.mxu0 %v549
        %v674 = vpop.f32.mrf.mxu0
        %v675 = vadd.f32 0.0, %v674
        %v676 = vpop.f32.mrf.mxu0
        %677 = vmatprep.mubr.f32.mxu0 0.0
        %678 = vmatmul.mubr.f32.gmra.mxu0 %v552
        %v679 = vpop.f32.mrf.mxu0
        %v680 = vadd.f32 0.0, %v679
        %v681 = vpop.f32.mrf.mxu0
        %682 = vdwg.mxu0
        %v683 = vmul.f32 %v645, 0.25
        %v684 = vmul.f32 %v650, 0.25
        %v685 = vmul.f32 %v655, 0.25
        %v686 = vmul.f32 %v660, 0.25
        %v687 = vmul.f32 %v665, 0.25
        %v688 = vmul.f32 %v670, 0.25
        %v689 = vmul.f32 %v675, 0.25
        %v690 = vmul.f32 %v680, 0.25
        %vm691 = vcmask 523264
        %692 = vst.msk [vmem:[%s340] sm:$0xff] %vm691, %v683
        %693 = vst.msk [vmem:[%s340 + $0x8] sm:$0xff] %vm691, %v684
        %694 = vst.msk [vmem:[%s340 + $0x10] sm:$0xff] %vm691, %v685
        %695 = vst.msk [vmem:[%s340 + $0x18] sm:$0xff] %vm691, %v686
        %696 = vst.msk [vmem:[%s340 + $0x20] sm:$0xff] %vm691, %v687
        %697 = vst.msk [vmem:[%s340 + $0x28] sm:$0xff] %vm691, %v688
        %698 = vst.msk [vmem:[%s340 + $0x30] sm:$0xff] %vm691, %v689
        %699 = vst.msk [vmem:[%s340 + $0x38] sm:$0xff] %vm691, %v690
        %v700 = vsel %vm691, %v683, -inf
        %701 = vmax.xlane.f32.xlu0 %v700
        %v702 = vpop.xlane.xlu0 %701
        %v703 = vsel %vm691, %v684, -inf
        %704 = vmax.xlane.f32.xlu0 %v703
        %v705 = vpop.xlane.xlu0 %704
        %v706 = vsel %vm691, %v685, -inf
        %707 = vmax.xlane.f32.xlu0 %v706
        %v708 = vpop.xlane.xlu0 %707
        %v709 = vsel %vm691, %v686, -inf
        %710 = vmax.xlane.f32.xlu0 %v709
        %v711 = vpop.xlane.xlu0 %710
        %v712 = vsel %vm691, %v687, -inf
        %713 = vmax.xlane.f32.xlu0 %v712
        %v714 = vpop.xlane.xlu0 %713
        %v715 = vsel %vm691, %v688, -inf
        %716 = vmax.xlane.f32.xlu0 %v715
        %v717 = vpop.xlane.xlu0 %716
        %v718 = vsel %vm691, %v689, -inf
        %719 = vmax.xlane.f32.xlu0 %v718
        %v720 = vpop.xlane.xlu0 %719
        %v721 = vsel %vm691, %v690, -inf
        %722 = vmax.xlane.f32.xlu0 %v721
        %v723 = vpop.xlane.xlu0 %722
        %v724 = vsub.f32 %v683, %v702
        %v725 = vsub.f32 %v684, %v705
        %v726 = vsub.f32 %v685, %v708
        %v727 = vsub.f32 %v686, %v711
        %v728 = vsub.f32 %v687, %v714
        %v729 = vsub.f32 %v688, %v717
        %v730 = vsub.f32 %v689, %v720
        %v731 = vsub.f32 %v690, %v723
        %v732 = vmul.f32 %v724, 1.442695
        %v733 = vpow.pop %v732
        %v734 = vmul.f32 %v725, 1.442695
        %v735 = vpow.pop %v734
        %v736 = vmul.f32 %v726, 1.442695
        %v737 = vpow.pop %v736
        %v738 = vmul.f32 %v727, 1.442695
        %v739 = vpow.pop %v738
        %v740 = vmul.f32 %v728, 1.442695
        %v741 = vpow.pop %v740
        %v742 = vmul.f32 %v729, 1.442695
        %v743 = vpow.pop %v742
        %v744 = vmul.f32 %v730, 1.442695
        %v745 = vpow.pop %v744
        %v746 = vmul.f32 %v731, 1.442695
        %v747 = vpow.pop %v746
        %v748 = vsel %vm691, %v733, 0.0
        %749 = vadd.xlane.f32.xlu0 %v748
        %v750 = vpop.xlane.xlu0 %749
        %v751 = vsel %vm691, %v735, 0.0
        %752 = vadd.xlane.f32.xlu0 %v751
        %v753 = vpop.xlane.xlu0 %752
        %v754 = vsel %vm691, %v737, 0.0
        %755 = vadd.xlane.f32.xlu0 %v754
        %v756 = vpop.xlane.xlu0 %755
        %v757 = vsel %vm691, %v739, 0.0
        %758 = vadd.xlane.f32.xlu0 %v757
        %v759 = vpop.xlane.xlu0 %758
        %v760 = vsel %vm691, %v741, 0.0
        %761 = vadd.xlane.f32.xlu0 %v760
        %v762 = vpop.xlane.xlu0 %761
        %v763 = vsel %vm691, %v743, 0.0
        %764 = vadd.xlane.f32.xlu0 %v763
        %v765 = vpop.xlane.xlu0 %764
        %v766 = vsel %vm691, %v745, 0.0
        %767 = vadd.xlane.f32.xlu0 %v766
        %v768 = vpop.xlane.xlu0 %767
        %v769 = vsel %vm691, %v747, 0.0
        %770 = vadd.xlane.f32.xlu0 %v769
        %v771 = vpop.xlane.xlu0 %770
        %v772 = vrcp.pop %v750
        %v773 = vmul.f32 %v733, %v772
        %v774 = vrcp.pop %v753
        %v775 = vmul.f32 %v735, %v774
        %v776 = vrcp.pop %v756
        %v777 = vmul.f32 %v737, %v776
        %v778 = vrcp.pop %v759
        %v779 = vmul.f32 %v739, %v778
        %v780 = vrcp.pop %v762
        %v781 = vmul.f32 %v741, %v780
        %v782 = vrcp.pop %v765
        %v783 = vmul.f32 %v743, %v782
        %v784 = vrcp.pop %v768
        %v785 = vmul.f32 %v745, %v784
        %v786 = vrcp.pop %v771
        %v787 = vmul.f32 %v747, %v786
        %v788 = vld [vmem:[%s360] sm:$0xff]
        %v789 = vld [vmem:[%s360 + $0x8] sm:$0xff]
        %v790 = vld [vmem:[%s360 + $0x10] sm:$0xff]
        %v791 = vld [vmem:[%s360 + $0x18] sm:$0xff]
        %v792 = vld [vmem:[%s360 + $0x20] sm:$0xff]
        %v793 = vld [vmem:[%s360 + $0x28] sm:$0xff]
        %v794 = vld [vmem:[%s360 + $0x30] sm:$0xff]
        %v795 = vld [vmem:[%s360 + $0x38] sm:$0xff]
        %v797 = vsel %vm691, %v773, 0
        %v800 = vsel %vm691, %v775, 0
        %v803 = vsel %vm691, %v777, 0
        %v806 = vsel %vm691, %v779, 0
        %v809 = vsel %vm691, %v781, 0
        %v812 = vsel %vm691, %v783, 0
        %v815 = vsel %vm691, %v785, 0
        %v818 = vsel %vm691, %v787, 0
        %820 = vmatprep.subr.mxu0 0.0
        %821 = vmatpush1.msra.mxu0 0.0
        %822 = vmatprep.subr.mxu0 0.0
        %823 = vmatpush1.msra.mxu0 0.0
        %824 = vmatprep.subr.mxu0 0.0
        %825 = vmatpush1.msra.mxu0 0.0
        %826 = vmatprep.subr.mxu0 0.0
        %827 = vmatpush1.msra.mxu0 0.0
        %828 = vmatprep.subr.mxu0 0.0
        %829 = vmatpush1.msra.mxu0 0.0
        %830 = vmatprep.subr.mxu0 0.0
        %831 = vmatpush1.msra.mxu0 0.0
        %832 = vmatprep.subr.mxu0 0.0
        %833 = vmatpush1.msra.mxu0 0.0
        %834 = vmatprep.subr.mxu0 0.0
        %835 = vmatpush1.msra.mxu0 0.0
        %836 = vmatprep.subr.mxu0 0.0
        %837 = vmatpush1.msra.mxu0 %v795
        %838 = vmatprep.subr.mxu0 0.0
        %839 = vmatpush1.msra.mxu0 %v794
        %840 = vmatprep.subr.mxu0 0.0
        %841 = vmatpush1.msra.mxu0 %v793
        %842 = vmatprep.subr.mxu0 0.0
        %843 = vmatpush1.msra.mxu0 %v792
        %844 = vmatprep.subr.mxu0 0.0
        %845 = vmatpush1.msra.mxu0 %v791
        %846 = vmatprep.subr.mxu0 0.0
        %847 = vmatpush1.msra.mxu0 %v790
        %848 = vmatprep.subr.mxu0 0.0
        %849 = vmatpush1.msra.mxu0 %v789
        %850 = vmatprep.subr.mxu0 0.0
        %851 = vmatpush1.msra.mxu0 %v788
        %852 = vmatprep.subr.mxu0 0.0
        %853 = vmatpush2.msra.mxu0 0.0
        %854 = vmatprep.subr.mxu0 0.0
        %855 = vmatpush2.msra.mxu0 0.0
        %856 = vmatprep.subr.mxu0 0.0
        %857 = vmatpush2.msra.mxu0 0.0
        %858 = vmatprep.subr.mxu0 0.0
        %859 = vmatpush2.msra.mxu0 0.0
        %860 = vmatprep.subr.mxu0 0.0
        %861 = vmatpush2.msra.mxu0 0.0
        %862 = vmatprep.subr.mxu0 0.0
        %863 = vmatpush2.msra.mxu0 0.0
        %864 = vmatprep.subr.mxu0 0.0
        %865 = vmatpush2.msra.mxu0 0.0
        %866 = vmatprep.subr.mxu0 0.0
        %867 = vmatpush2.msra.mxu0 0.0
        %868 = vmatprep.subr.mxu0 0.0
        %869 = vmatpush2.msra.mxu0 0.0
        %870 = vmatprep.subr.mxu0 0.0
        %871 = vmatpush2.msra.mxu0 0.0
        %872 = vmatprep.subr.mxu0 0.0
        %873 = vmatpush2.msra.mxu0 0.0
        %874 = vmatprep.subr.mxu0 0.0
        %875 = vmatpush2.msra.mxu0 0.0
        %876 = vmatprep.subr.mxu0 0.0
        %877 = vmatpush2.msra.mxu0 0.0
        %878 = vmatprep.subr.mxu0 0.0
        %879 = vmatpush2.msra.mxu0 0.0
        %880 = vmatprep.subr.mxu0 0.0
        %881 = vmatpush2.msra.mxu0 0.0
        %882 = vmatprep.subr.mxu0 0.0
        %883 = vmatpush2.msra.mxu0 0.0
        %884 = vmatprep.mubr.f32.mxu0 0.0
        %885 = vmatmul.mubr.f32.gmra.mxu0 %v797
        %v886 = vpop.f32.mrf.mxu0
        %v887 = vadd.f32 0.0, %v886
        %v888 = vpop.f32.mrf.mxu0
        %889 = vmatprep.mubr.f32.mxu0 0.0
        %890 = vmatmul.mubr.f32.gmra.mxu0 %v800
        %v891 = vpop.f32.mrf.mxu0
        %v892 = vadd.f32 0.0, %v891
        %v893 = vpop.f32.mrf.mxu0
        %894 = vmatprep.mubr.f32.mxu0 0.0
        %895 = vmatmul.mubr.f32.gmra.mxu0 %v803
        %v896 = vpop.f32.mrf.mxu0
        %v897 = vadd.f32 0.0, %v896
        %v898 = vpop.f32.mrf.mxu0
        %899 = vmatprep.mubr.f32.mxu0 0.0
        %900 = vmatmul.mubr.f32.gmra.mxu0 %v806
        %v901 = vpop.f32.mrf.mxu0
        %v902 = vadd.f32 0.0, %v901
        %v903 = vpop.f32.mrf.mxu0
        %904 = vmatprep.mubr.f32.mxu0 0.0
        %905 = vmatmul.mubr.f32.gmra.mxu0 %v809
        %v906 = vpop.f32.mrf.mxu0
        %v907 = vadd.f32 0.0, %v906
        %v908 = vpop.f32.mrf.mxu0
        %909 = vmatprep.mubr.f32.mxu0 0.0
        %910 = vmatmul.mubr.f32.gmra.mxu0 %v812
        %v911 = vpop.f32.mrf.mxu0
        %v912 = vadd.f32 0.0, %v911
        %v913 = vpop.f32.mrf.mxu0
        %914 = vmatprep.mubr.f32.mxu0 0.0
        %915 = vmatmul.mubr.f32.gmra.mxu0 %v815
        %v916 = vpop.f32.mrf.mxu0
        %v917 = vadd.f32 0.0, %v916
        %v918 = vpop.f32.mrf.mxu0
        %919 = vmatprep.mubr.f32.mxu0 0.0
        %920 = vmatmul.mubr.f32.gmra.mxu0 %v818
        %v921 = vpop.f32.mrf.mxu0
        %v922 = vadd.f32 0.0, %v921
        %v923 = vpop.f32.mrf.mxu0
        %924 = vdwg.mxu0
        %v925 = vld [vmem:[%s5] sm:$0xff]
        %v926 = vld [vmem:[%s5 + $0x8] sm:$0xff]
        %s927 = scalar_lea.vmem %s355, 64
        %v928 = vld [vmem:[%s927] sm:$0xff]
        %v929 = vld [vmem:[%s927 + $0x8] sm:$0xff]
        %v930 = vld [vmem:[%s927 + $0x10] sm:$0xff]
        %v931 = vld [vmem:[%s927 + $0x18] sm:$0xff]
        %v932 = vld [vmem:[%s927 + $0x20] sm:$0xff]
        %v933 = vld [vmem:[%s927 + $0x28] sm:$0xff]
        %v934 = vld [vmem:[%s927 + $0x30] sm:$0xff]
        %v935 = vld [vmem:[%s927 + $0x38] sm:$0xff]
        %936 = vrot.lane.b32.xlu0 %v483, 112
        %v937 = vpop.permute.xlu0 %936
        %938 = vrot.lane.b32.xlu0 %v488, 112
        %v939 = vpop.permute.xlu0 %938
        %940 = vrot.lane.b32.xlu0 %v493, 112
        %v941 = vpop.permute.xlu0 %940
        %942 = vrot.lane.b32.xlu0 %v498, 112
        %v943 = vpop.permute.xlu0 %942
        %944 = vrot.lane.b32.xlu0 %v503, 112
        %v945 = vpop.permute.xlu0 %944
        %946 = vrot.lane.b32.xlu0 %v508, 112
        %v947 = vpop.permute.xlu0 %946
        %948 = vrot.lane.b32.xlu0 %v513, 112
        %v949 = vpop.permute.xlu0 %948
        %950 = vrot.lane.b32.xlu0 %v518, 112
        %v951 = vpop.permute.xlu0 %950
        %v952 = vsel %vm529, %v937, 0
        %v954 = vsel %vm529, %v939, 0
        %v956 = vsel %vm529, %v941, 0
        %v958 = vsel %vm529, %v943, 0
        %v960 = vsel %vm529, %v945, 0
        %v962 = vsel %vm529, %v947, 0
        %v964 = vsel %vm529, %v949, 0
        %v966 = vsel %vm529, %v951, 0
        %v969 = vsel %vm529, %v928, 0
        %v972 = vsel %vm529, %v929, 0
        %v975 = vsel %vm529, %v930, 0
        %v978 = vsel %vm529, %v931, 0
        %v981 = vsel %vm529, %v932, 0
        %v984 = vsel %vm529, %v933, 0
        %v987 = vsel %vm529, %v934, 0
        %v990 = vsel %vm529, %v935, 0
        %992 = vmatprep.subr.mxu0 0.0
        %993 = vmatpush1.xpose.msra.mxu0 0.0
        %994 = vmatprep.subr.mxu0 0.0
        %995 = vmatpush1.xpose.msra.mxu0 0.0
        %996 = vmatprep.subr.mxu0 0.0
        %997 = vmatpush1.xpose.msra.mxu0 0.0
        %998 = vmatprep.subr.mxu0 0.0
        %999 = vmatpush1.xpose.msra.mxu0 0.0
        %1000 = vmatprep.subr.mxu0 0.0
        %1001 = vmatpush1.xpose.msra.mxu0 0.0
        %1002 = vmatprep.subr.mxu0 0.0
        %1003 = vmatpush1.xpose.msra.mxu0 0.0
        %1004 = vmatprep.subr.mxu0 0.0
        %1005 = vmatpush1.xpose.msra.mxu0 0.0
        %1006 = vmatprep.subr.mxu0 0.0
        %1007 = vmatpush1.xpose.msra.mxu0 0.0
        %1008 = vmatprep.subr.mxu0 0.0
        %1009 = vmatpush1.xpose.msra.mxu0 %v990
        %1010 = vmatprep.subr.mxu0 0.0
        %1011 = vmatpush1.xpose.msra.mxu0 %v987
        %1012 = vmatprep.subr.mxu0 0.0
        %1013 = vmatpush1.xpose.msra.mxu0 %v984
        %1014 = vmatprep.subr.mxu0 0.0
        %1015 = vmatpush1.xpose.msra.mxu0 %v981
        %1016 = vmatprep.subr.mxu0 0.0
        %1017 = vmatpush1.xpose.msra.mxu0 %v978
        %1018 = vmatprep.subr.mxu0 0.0
        %1019 = vmatpush1.xpose.msra.mxu0 %v975
        %1020 = vmatprep.subr.mxu0 0.0
        %1021 = vmatpush1.xpose.msra.mxu0 %v972
        %1022 = vmatprep.subr.mxu0 0.0
        %1023 = vmatpush1.xpose.msra.mxu0 %v969
        %1024 = vmatprep.subr.mxu0 0.0
        %1025 = vmatpush2.xpose.msra.mxu0 0.0
        %1026 = vmatprep.subr.mxu0 0.0
        %1027 = vmatpush2.xpose.msra.mxu0 0.0
        %1028 = vmatprep.subr.mxu0 0.0
        %1029 = vmatpush2.xpose.msra.mxu0 0.0
        %1030 = vmatprep.subr.mxu0 0.0
        %1031 = vmatpush2.xpose.msra.mxu0 0.0
        %1032 = vmatprep.subr.mxu0 0.0
        %1033 = vmatpush2.xpose.msra.mxu0 0.0
        %1034 = vmatprep.subr.mxu0 0.0
        %1035 = vmatpush2.xpose.msra.mxu0 0.0
        %1036 = vmatprep.subr.mxu0 0.0
        %1037 = vmatpush2.xpose.msra.mxu0 0.0
        %1038 = vmatprep.subr.mxu0 0.0
        %1039 = vmatpush2.xpose.msra.mxu0 0.0
        %1040 = vmatprep.subr.mxu0 0.0
        %1041 = vmatpush2.xpose.msra.mxu0 0.0
        %1042 = vmatprep.subr.mxu0 0.0
        %1043 = vmatpush2.xpose.msra.mxu0 0.0
        %1044 = vmatprep.subr.mxu0 0.0
        %1045 = vmatpush2.xpose.msra.mxu0 0.0
        %1046 = vmatprep.subr.mxu0 0.0
        %1047 = vmatpush2.xpose.msra.mxu0 0.0
        %1048 = vmatprep.subr.mxu0 0.0
        %1049 = vmatpush2.xpose.msra.mxu0 0.0
        %1050 = vmatprep.subr.mxu0 0.0
        %1051 = vmatpush2.xpose.msra.mxu0 0.0
        %1052 = vmatprep.subr.mxu0 0.0
        %1053 = vmatpush2.xpose.msra.mxu0 0.0
        %1054 = vmatprep.subr.mxu0 0.0
        %1055 = vmatpush2.xpose.msra.mxu0 0.0
        %1056 = vmatprep.mubr.f32.mxu0 0.0
        %1057 = vmatmul.mubr.f32.gmra.mxu0 %v952
        %v1058 = vpop.f32.mrf.mxu0
        %v1059 = vadd.f32 0.0, %v1058
        %v1060 = vpop.f32.mrf.mxu0
        %1061 = vmatprep.mubr.f32.mxu0 0.0
        %1062 = vmatmul.mubr.f32.gmra.mxu0 %v954
        %v1063 = vpop.f32.mrf.mxu0
        %v1064 = vadd.f32 0.0, %v1063
        %v1065 = vpop.f32.mrf.mxu0
        %1066 = vmatprep.mubr.f32.mxu0 0.0
        %1067 = vmatmul.mubr.f32.gmra.mxu0 %v956
        %v1068 = vpop.f32.mrf.mxu0
        %v1069 = vadd.f32 0.0, %v1068
        %v1070 = vpop.f32.mrf.mxu0
        %1071 = vmatprep.mubr.f32.mxu0 0.0
        %1072 = vmatmul.mubr.f32.gmra.mxu0 %v958
        %v1073 = vpop.f32.mrf.mxu0
        %v1074 = vadd.f32 0.0, %v1073
        %v1075 = vpop.f32.mrf.mxu0
        %1076 = vmatprep.mubr.f32.mxu0 0.0
        %1077 = vmatmul.mubr.f32.gmra.mxu0 %v960
        %v1078 = vpop.f32.mrf.mxu0
        %v1079 = vadd.f32 0.0, %v1078
        %v1080 = vpop.f32.mrf.mxu0
        %1081 = vmatprep.mubr.f32.mxu0 0.0
        %1082 = vmatmul.mubr.f32.gmra.mxu0 %v962
        %v1083 = vpop.f32.mrf.mxu0
        %v1084 = vadd.f32 0.0, %v1083
        %v1085 = vpop.f32.mrf.mxu0
        %1086 = vmatprep.mubr.f32.mxu0 0.0
        %1087 = vmatmul.mubr.f32.gmra.mxu0 %v964
        %v1088 = vpop.f32.mrf.mxu0
        %v1089 = vadd.f32 0.0, %v1088
        %v1090 = vpop.f32.mrf.mxu0
        %1091 = vmatprep.mubr.f32.mxu0 0.0
        %1092 = vmatmul.mubr.f32.gmra.mxu0 %v966
        %v1093 = vpop.f32.mrf.mxu0
        %v1094 = vadd.f32 0.0, %v1093
        %v1095 = vpop.f32.mrf.mxu0
        %1096 = vdwg.mxu0
        %v1097 = vmul.f32 %v1059, 0.25
        %v1098 = vmul.f32 %v1064, 0.25
        %v1099 = vmul.f32 %v1069, 0.25
        %v1100 = vmul.f32 %v1074, 0.25
        %v1101 = vmul.f32 %v1079, 0.25
        %v1102 = vmul.f32 %v1084, 0.25
        %v1103 = vmul.f32 %v1089, 0.25
        %v1104 = vmul.f32 %v1094, 0.25
        %s1105 = scalar_lea.vmem %s340, 64 [#allocation2]
        %1106 = vst.msk [vmem:[%s1105] sm:$0xff] %vm691, %v1097
        %1107 = vst.msk [vmem:[%s1105 + $0x8] sm:$0xff] %vm691, %v1098
        %1108 = vst.msk [vmem:[%s1105 + $0x10] sm:$0xff] %vm691, %v1099
        %1109 = vst.msk [vmem:[%s1105 + $0x18] sm:$0xff] %vm691, %v1100
        %1110 = vst.msk [vmem:[%s1105 + $0x20] sm:$0xff] %vm691, %v1101
        %1111 = vst.msk [vmem:[%s1105 + $0x28] sm:$0xff] %vm691, %v1102
        %1112 = vst.msk [vmem:[%s1105 + $0x30] sm:$0xff] %vm691, %v1103
        %1113 = vst.msk [vmem:[%s1105 + $0x38] sm:$0xff] %vm691, %v1104
        %v1114 = vsel %vm691, %v1097, -inf
        %1115 = vmax.xlane.f32.xlu0 %v1114
        %v1116 = vpop.xlane.xlu0 %1115
        %v1117 = vsel %vm691, %v1098, -inf
        %1118 = vmax.xlane.f32.xlu0 %v1117
        %v1119 = vpop.xlane.xlu0 %1118
        %v1120 = vsel %vm691, %v1099, -inf
        %1121 = vmax.xlane.f32.xlu0 %v1120
        %v1122 = vpop.xlane.xlu0 %1121
        %v1123 = vsel %vm691, %v1100, -inf
        %1124 = vmax.xlane.f32.xlu0 %v1123
        %v1125 = vpop.xlane.xlu0 %1124
        %v1126 = vsel %vm691, %v1101, -inf
        %1127 = vmax.xlane.f32.xlu0 %v1126
        %v1128 = vpop.xlane.xlu0 %1127
        %v1129 = vsel %vm691, %v1102, -inf
        %1130 = vmax.xlane.f32.xlu0 %v1129
        %v1131 = vpop.xlane.xlu0 %1130
        %v1132 = vsel %vm691, %v1103, -inf
        %1133 = vmax.xlane.f32.xlu0 %v1132
        %v1134 = vpop.xlane.xlu0 %1133
        %v1135 = vsel %vm691, %v1104, -inf
        %1136 = vmax.xlane.f32.xlu0 %v1135
        %v1137 = vpop.xlane.xlu0 %1136
        %v1138 = vsub.f32 %v1097, %v1116
        %v1139 = vsub.f32 %v1098, %v1119
        %v1140 = vsub.f32 %v1099, %v1122
        %v1141 = vsub.f32 %v1100, %v1125
        %v1142 = vsub.f32 %v1101, %v1128
        %v1143 = vsub.f32 %v1102, %v1131
        %v1144 = vsub.f32 %v1103, %v1134
        %v1145 = vsub.f32 %v1104, %v1137
        %v1146 = vmul.f32 %v1138, 1.442695
        %v1147 = vpow.pop %v1146
        %v1148 = vmul.f32 %v1139, 1.442695
        %v1149 = vpow.pop %v1148
        %v1150 = vmul.f32 %v1140, 1.442695
        %v1151 = vpow.pop %v1150
        %v1152 = vmul.f32 %v1141, 1.442695
        %v1153 = vpow.pop %v1152
        %v1154 = vmul.f32 %v1142, 1.442695
        %v1155 = vpow.pop %v1154
        %v1156 = vmul.f32 %v1143, 1.442695
        %v1157 = vpow.pop %v1156
        %v1158 = vmul.f32 %v1144, 1.442695
        %v1159 = vpow.pop %v1158
        %v1160 = vmul.f32 %v1145, 1.442695
        %v1161 = vpow.pop %v1160
        %v1162 = vsel %vm691, %v1147, 0.0
        %1163 = vadd.xlane.f32.xlu0 %v1162
        %v1164 = vpop.xlane.xlu0 %1163
        %v1165 = vsel %vm691, %v1149, 0.0
        %1166 = vadd.xlane.f32.xlu0 %v1165
        %v1167 = vpop.xlane.xlu0 %1166
        %v1168 = vsel %vm691, %v1151, 0.0
        %1169 = vadd.xlane.f32.xlu0 %v1168
        %v1170 = vpop.xlane.xlu0 %1169
        %v1171 = vsel %vm691, %v1153, 0.0
        %1172 = vadd.xlane.f32.xlu0 %v1171
        %v1173 = vpop.xlane.xlu0 %1172
        %v1174 = vsel %vm691, %v1155, 0.0
        %1175 = vadd.xlane.f32.xlu0 %v1174
        %v1176 = vpop.xlane.xlu0 %1175
        %v1177 = vsel %vm691, %v1157, 0.0
        %1178 = vadd.xlane.f32.xlu0 %v1177
        %v1179 = vpop.xlane.xlu0 %1178
        %v1180 = vsel %vm691, %v1159, 0.0
        %1181 = vadd.xlane.f32.xlu0 %v1180
        %v1182 = vpop.xlane.xlu0 %1181
        %v1183 = vsel %vm691, %v1161, 0.0
        %1184 = vadd.xlane.f32.xlu0 %v1183
        %v1185 = vpop.xlane.xlu0 %1184
        %v1186 = vrcp.pop %v1164
        %v1187 = vmul.f32 %v1147, %v1186
        %v1188 = vrcp.pop %v1167
        %v1189 = vmul.f32 %v1149, %v1188
        %v1190 = vrcp.pop %v1170
        %v1191 = vmul.f32 %v1151, %v1190
        %v1192 = vrcp.pop %v1173
        %v1193 = vmul.f32 %v1153, %v1192
        %v1194 = vrcp.pop %v1176
        %v1195 = vmul.f32 %v1155, %v1194
        %v1196 = vrcp.pop %v1179
        %v1197 = vmul.f32 %v1157, %v1196
        %v1198 = vrcp.pop %v1182
        %v1199 = vmul.f32 %v1159, %v1198
        %v1200 = vrcp.pop %v1185
        %v1201 = vmul.f32 %v1161, %v1200
        %s1202 = scalar_lea.vmem %s360, 64
        %v1203 = vld [vmem:[%s1202] sm:$0xff]
        %v1204 = vld [vmem:[%s1202 + $0x8] sm:$0xff]
        %v1205 = vld [vmem:[%s1202 + $0x10] sm:$0xff]
        %v1206 = vld [vmem:[%s1202 + $0x18] sm:$0xff]
        %v1207 = vld [vmem:[%s1202 + $0x20] sm:$0xff]
        %v1208 = vld [vmem:[%s1202 + $0x28] sm:$0xff]
        %v1209 = vld [vmem:[%s1202 + $0x30] sm:$0xff]
        %v1210 = vld [vmem:[%s1202 + $0x38] sm:$0xff]
        %v1212 = vsel %vm691, %v1187, 0
        %v1215 = vsel %vm691, %v1189, 0
        %v1218 = vsel %vm691, %v1191, 0
        %v1221 = vsel %vm691, %v1193, 0
        %v1224 = vsel %vm691, %v1195, 0
        %v1227 = vsel %vm691, %v1197, 0
        %v1230 = vsel %vm691, %v1199, 0
        %v1233 = vsel %vm691, %v1201, 0
        %1235 = vmatprep.subr.mxu0 0.0
        %1236 = vmatpush1.msra.mxu0 0.0
        %1237 = vmatprep.subr.mxu0 0.0
        %1238 = vmatpush1.msra.mxu0 0.0
        %1239 = vmatprep.subr.mxu0 0.0
        %1240 = vmatpush1.msra.mxu0 0.0
        %1241 = vmatprep.subr.mxu0 0.0
        %1242 = vmatpush1.msra.mxu0 0.0
        %1243 = vmatprep.subr.mxu0 0.0
        %1244 = vmatpush1.msra.mxu0 0.0
        %1245 = vmatprep.subr.mxu0 0.0
        %1246 = vmatpush1.msra.mxu0 0.0
        %1247 = vmatprep.subr.mxu0 0.0
        %1248 = vmatpush1.msra.mxu0 0.0
        %1249 = vmatprep.subr.mxu0 0.0
        %1250 = vmatpush1.msra.mxu0 0.0
        %1251 = vmatprep.subr.mxu0 0.0
        %1252 = vmatpush1.msra.mxu0 %v1210
        %1253 = vmatprep.subr.mxu0 0.0
        %1254 = vmatpush1.msra.mxu0 %v1209
        %1255 = vmatprep.subr.mxu0 0.0
        %1256 = vmatpush1.msra.mxu0 %v1208
        %1257 = vmatprep.subr.mxu0 0.0
        %1258 = vmatpush1.msra.mxu0 %v1207
        %1259 = vmatprep.subr.mxu0 0.0
        %1260 = vmatpush1.msra.mxu0 %v1206
        %1261 = vmatprep.subr.mxu0 0.0
        %1262 = vmatpush1.msra.mxu0 %v1205
        %1263 = vmatprep.subr.mxu0 0.0
        %1264 = vmatpush1.msra.mxu0 %v1204
        %1265 = vmatprep.subr.mxu0 0.0
        %1266 = vmatpush1.msra.mxu0 %v1203
        %1267 = vmatprep.subr.mxu0 0.0
        %1268 = vmatpush2.msra.mxu0 0.0
        %1269 = vmatprep.subr.mxu0 0.0
        %1270 = vmatpush2.msra.mxu0 0.0
        %1271 = vmatprep.subr.mxu0 0.0
        %1272 = vmatpush2.msra.mxu0 0.0
        %1273 = vmatprep.subr.mxu0 0.0
        %1274 = vmatpush2.msra.mxu0 0.0
        %1275 = vmatprep.subr.mxu0 0.0
        %1276 = vmatpush2.msra.mxu0 0.0
        %1277 = vmatprep.subr.mxu0 0.0
        %1278 = vmatpush2.msra.mxu0 0.0
        %1279 = vmatprep.subr.mxu0 0.0
        %1280 = vmatpush2.msra.mxu0 0.0
        %1281 = vmatprep.subr.mxu0 0.0
        %1282 = vmatpush2.msra.mxu0 0.0
        %1283 = vmatprep.subr.mxu0 0.0
        %1284 = vmatpush2.msra.mxu0 0.0
        %1285 = vmatprep.subr.mxu0 0.0
        %1286 = vmatpush2.msra.mxu0 0.0
        %1287 = vmatprep.subr.mxu0 0.0
        %1288 = vmatpush2.msra.mxu0 0.0
        %1289 = vmatprep.subr.mxu0 0.0
        %1290 = vmatpush2.msra.mxu0 0.0
        %1291 = vmatprep.subr.mxu0 0.0
        %1292 = vmatpush2.msra.mxu0 0.0
        %1293 = vmatprep.subr.mxu0 0.0
        %1294 = vmatpush2.msra.mxu0 0.0
        %1295 = vmatprep.subr.mxu0 0.0
        %1296 = vmatpush2.msra.mxu0 0.0
        %1297 = vmatprep.subr.mxu0 0.0
        %1298 = vmatpush2.msra.mxu0 0.0
        %1299 = vmatprep.mubr.f32.mxu0 0.0
        %1300 = vmatmul.mubr.f32.gmra.mxu0 %v1212
        %v1301 = vpop.f32.mrf.mxu0
        %v1302 = vadd.f32 0.0, %v1301
        %v1303 = vpop.f32.mrf.mxu0
        %1304 = vmatprep.mubr.f32.mxu0 0.0
        %1305 = vmatmul.mubr.f32.gmra.mxu0 %v1215
        %v1306 = vpop.f32.mrf.mxu0
        %v1307 = vadd.f32 0.0, %v1306
        %v1308 = vpop.f32.mrf.mxu0
        %1309 = vmatprep.mubr.f32.mxu0 0.0
        %1310 = vmatmul.mubr.f32.gmra.mxu0 %v1218
        %v1311 = vpop.f32.mrf.mxu0
        %v1312 = vadd.f32 0.0, %v1311
        %v1313 = vpop.f32.mrf.mxu0
        %1314 = vmatprep.mubr.f32.mxu0 0.0
        %1315 = vmatmul.mubr.f32.gmra.mxu0 %v1221
        %v1316 = vpop.f32.mrf.mxu0
        %v1317 = vadd.f32 0.0, %v1316
        %v1318 = vpop.f32.mrf.mxu0
        %1319 = vmatprep.mubr.f32.mxu0 0.0
        %1320 = vmatmul.mubr.f32.gmra.mxu0 %v1224
        %v1321 = vpop.f32.mrf.mxu0
        %v1322 = vadd.f32 0.0, %v1321
        %v1323 = vpop.f32.mrf.mxu0
        %1324 = vmatprep.mubr.f32.mxu0 0.0
        %1325 = vmatmul.mubr.f32.gmra.mxu0 %v1227
        %v1326 = vpop.f32.mrf.mxu0
        %v1327 = vadd.f32 0.0, %v1326
        %v1328 = vpop.f32.mrf.mxu0
        %1329 = vmatprep.mubr.f32.mxu0 0.0
        %1330 = vmatmul.mubr.f32.gmra.mxu0 %v1230
        %v1331 = vpop.f32.mrf.mxu0
        %v1332 = vadd.f32 0.0, %v1331
        %v1333 = vpop.f32.mrf.mxu0
        %1334 = vmatprep.mubr.f32.mxu0 0.0
        %1335 = vmatmul.mubr.f32.gmra.mxu0 %v1233
        %v1336 = vpop.f32.mrf.mxu0
        %v1337 = vadd.f32 0.0, %v1336
        %v1338 = vpop.f32.mrf.mxu0
        %1339 = vdwg.mxu0
        %s1340 = scalar_lea.vmem %s5, 16
        %v1341 = vld [vmem:[%s1340] sm:$0xff]
        %v1342 = vld [vmem:[%s1340 + $0x8] sm:$0xff]
        %v1344 = vsel %vm529, %v1302, 0
        %v1347 = vsel %vm529, %v1307, 0
        %v1350 = vsel %vm529, %v1312, 0
        %v1353 = vsel %vm529, %v1317, 0
        %v1356 = vsel %vm529, %v1322, 0
        %v1359 = vsel %vm529, %v1327, 0
        %v1362 = vsel %vm529, %v1332, 0
        %v1365 = vsel %vm529, %v1337, 0
        %1367 = vmatprep.subr.mxu0 0.0
        %1368 = vmatpush1.msra.mxu0 0.0
        %1369 = vmatprep.subr.mxu0 0.0
        %1370 = vmatpush1.msra.mxu0 0.0
        %1371 = vmatprep.subr.mxu0 0.0
        %1372 = vmatpush1.msra.mxu0 0.0
        %1373 = vmatprep.subr.mxu0 0.0
        %1374 = vmatpush1.msra.mxu0 0.0
        %1375 = vmatprep.subr.mxu0 0.0
        %1376 = vmatpush1.msra.mxu0 0.0
        %1377 = vmatprep.subr.mxu0 0.0
        %1378 = vmatpush1.msra.mxu0 0.0
        %1379 = vmatprep.subr.mxu0 0.0
        %1380 = vmatpush1.msra.mxu0 0.0
        %1381 = vmatprep.subr.mxu0 0.0
        %1382 = vmatpush1.msra.mxu0 0.0
        %1383 = vmatprep.subr.mxu0 0.0
        %1384 = vmatpush1.msra.mxu0 0.0
        %1385 = vmatprep.subr.mxu0 0.0
        %1386 = vmatpush1.msra.mxu0 0.0
        %1387 = vmatprep.subr.mxu0 0.0
        %1388 = vmatpush1.msra.mxu0 0.0
        %1389 = vmatprep.subr.mxu0 0.0
        %1390 = vmatpush1.msra.mxu0 0.0
        %1391 = vmatprep.subr.mxu0 0.0
        %1392 = vmatpush1.msra.mxu0 0.0
        %1393 = vmatprep.subr.mxu0 0.0
        %1394 = vmatpush1.msra.mxu0 0.0
        %1395 = vmatprep.subr.mxu0 0.0
        %1396 = vmatpush1.msra.mxu0 %v1342
        %1397 = vmatprep.subr.mxu0 0.0
        %1398 = vmatpush1.msra.mxu0 %v1341
        %1399 = vmatprep.subr.mxu0 0.0
        %1400 = vmatpush2.msra.mxu0 0.0
        %1401 = vmatprep.subr.mxu0 0.0
        %1402 = vmatpush2.msra.mxu0 0.0
        %1403 = vmatprep.subr.mxu0 0.0
        %1404 = vmatpush2.msra.mxu0 0.0
        %1405 = vmatprep.subr.mxu0 0.0
        %1406 = vmatpush2.msra.mxu0 0.0
        %1407 = vmatprep.subr.mxu0 0.0
        %1408 = vmatpush2.msra.mxu0 0.0
        %1409 = vmatprep.subr.mxu0 0.0
        %1410 = vmatpush2.msra.mxu0 0.0
        %1411 = vmatprep.subr.mxu0 0.0
        %1412 = vmatpush2.msra.mxu0 0.0
        %1413 = vmatprep.subr.mxu0 0.0
        %1414 = vmatpush2.msra.mxu0 0.0
        %1415 = vmatprep.subr.mxu0 0.0
        %1416 = vmatpush2.msra.mxu0 0.0
        %1417 = vmatprep.subr.mxu0 0.0
        %1418 = vmatpush2.msra.mxu0 0.0
        %1419 = vmatprep.subr.mxu0 0.0
        %1420 = vmatpush2.msra.mxu0 0.0
        %1421 = vmatprep.subr.mxu0 0.0
        %1422 = vmatpush2.msra.mxu0 0.0
        %1423 = vmatprep.subr.mxu0 0.0
        %1424 = vmatpush2.msra.mxu0 0.0
        %1425 = vmatprep.subr.mxu0 0.0
        %1426 = vmatpush2.msra.mxu0 0.0
        %1427 = vmatprep.subr.mxu0 0.0
        %1428 = vmatpush2.msra.mxu0 0.0
        %1429 = vmatprep.subr.mxu0 0.0
        %1430 = vmatpush2.msra.mxu0 0.0
        %1431 = vmatprep.mubr.f32.mxu0 0.0
        %1432 = vmatmul.mubr.f32.gmra.mxu0 %v1344
        %v1433 = vpop.f32.mrf.mxu0
        %v1434 = vadd.f32 0.0, %v1433
        %v1435 = vpop.f32.mrf.mxu0
        %1436 = vmatprep.mubr.f32.mxu0 0.0
        %1437 = vmatmul.mubr.f32.gmra.mxu0 %v1347
        %v1438 = vpop.f32.mrf.mxu0
        %v1439 = vadd.f32 0.0, %v1438
        %v1440 = vpop.f32.mrf.mxu0
        %1441 = vmatprep.mubr.f32.mxu0 0.0
        %1442 = vmatmul.mubr.f32.gmra.mxu0 %v1350
        %v1443 = vpop.f32.mrf.mxu0
        %v1444 = vadd.f32 0.0, %v1443
        %v1445 = vpop.f32.mrf.mxu0
        %1446 = vmatprep.mubr.f32.mxu0 0.0
        %1447 = vmatmul.mubr.f32.gmra.mxu0 %v1353
        %v1448 = vpop.f32.mrf.mxu0
        %v1449 = vadd.f32 0.0, %v1448
        %v1450 = vpop.f32.mrf.mxu0
        %1451 = vmatprep.mubr.f32.mxu0 0.0
        %1452 = vmatmul.mubr.f32.gmra.mxu0 %v1356
        %v1453 = vpop.f32.mrf.mxu0
        %v1454 = vadd.f32 0.0, %v1453
        %v1455 = vpop.f32.mrf.mxu0
        %1456 = vmatprep.mubr.f32.mxu0 0.0
        %1457 = vmatmul.mubr.f32.gmra.mxu0 %v1359
        %v1458 = vpop.f32.mrf.mxu0
        %v1459 = vadd.f32 0.0, %v1458
        %v1460 = vpop.f32.mrf.mxu0
        %1461 = vmatprep.mubr.f32.mxu0 0.0
        %1462 = vmatmul.mubr.f32.gmra.mxu0 %v1362
        %v1463 = vpop.f32.mrf.mxu0
        %v1464 = vadd.f32 0.0, %v1463
        %v1465 = vpop.f32.mrf.mxu0
        %1466 = vmatprep.mubr.f32.mxu0 0.0
        %1467 = vmatmul.mubr.f32.gmra.mxu0 %v1365
        %v1468 = vpop.f32.mrf.mxu0
        %v1469 = vadd.f32 0.0, %v1468
        %v1470 = vpop.f32.mrf.mxu0
        %1471 = vdwg.mxu0
        %v1473 = vsel %vm529, %v887, 0
        %v1476 = vsel %vm529, %v892, 0
        %v1479 = vsel %vm529, %v897, 0
        %v1482 = vsel %vm529, %v902, 0
        %v1485 = vsel %vm529, %v907, 0
        %v1488 = vsel %vm529, %v912, 0
        %v1491 = vsel %vm529, %v917, 0
        %v1494 = vsel %vm529, %v922, 0
        %1496 = vmatprep.subr.mxu0 0.0
        %1497 = vmatpush1.msra.mxu0 0.0
        %1498 = vmatprep.subr.mxu0 0.0
        %1499 = vmatpush1.msra.mxu0 0.0
        %1500 = vmatprep.subr.mxu0 0.0
        %1501 = vmatpush1.msra.mxu0 0.0
        %1502 = vmatprep.subr.mxu0 0.0
        %1503 = vmatpush1.msra.mxu0 0.0
        %1504 = vmatprep.subr.mxu0 0.0
        %1505 = vmatpush1.msra.mxu0 0.0
        %1506 = vmatprep.subr.mxu0 0.0
        %1507 = vmatpush1.msra.mxu0 0.0
        %1508 = vmatprep.subr.mxu0 0.0
        %1509 = vmatpush1.msra.mxu0 0.0
        %1510 = vmatprep.subr.mxu0 0.0
        %1511 = vmatpush1.msra.mxu0 0.0
        %1512 = vmatprep.subr.mxu0 0.0
        %1513 = vmatpush1.msra.mxu0 0.0
        %1514 = vmatprep.subr.mxu0 0.0
        %1515 = vmatpush1.msra.mxu0 0.0
        %1516 = vmatprep.subr.mxu0 0.0
        %1517 = vmatpush1.msra.mxu0 0.0
        %1518 = vmatprep.subr.mxu0 0.0
        %1519 = vmatpush1.msra.mxu0 0.0
        %1520 = vmatprep.subr.mxu0 0.0
        %1521 = vmatpush1.msra.mxu0 0.0
        %1522 = vmatprep.subr.mxu0 0.0
        %1523 = vmatpush1.msra.mxu0 0.0
        %1524 = vmatprep.subr.mxu0 0.0
        %1525 = vmatpush1.msra.mxu0 %v926
        %1526 = vmatprep.subr.mxu0 0.0
        %1527 = vmatpush1.msra.mxu0 %v925
        %1528 = vmatprep.subr.mxu0 0.0
        %1529 = vmatpush2.msra.mxu0 0.0
        %1530 = vmatprep.subr.mxu0 0.0
        %1531 = vmatpush2.msra.mxu0 0.0
        %1532 = vmatprep.subr.mxu0 0.0
        %1533 = vmatpush2.msra.mxu0 0.0
        %1534 = vmatprep.subr.mxu0 0.0
        %1535 = vmatpush2.msra.mxu0 0.0
        %1536 = vmatprep.subr.mxu0 0.0
        %1537 = vmatpush2.msra.mxu0 0.0
        %1538 = vmatprep.subr.mxu0 0.0
        %1539 = vmatpush2.msra.mxu0 0.0
        %1540 = vmatprep.subr.mxu0 0.0
        %1541 = vmatpush2.msra.mxu0 0.0
        %1542 = vmatprep.subr.mxu0 0.0
        %1543 = vmatpush2.msra.mxu0 0.0
        %1544 = vmatprep.subr.mxu0 0.0
        %1545 = vmatpush2.msra.mxu0 0.0
        %1546 = vmatprep.subr.mxu0 0.0
        %1547 = vmatpush2.msra.mxu0 0.0
        %1548 = vmatprep.subr.mxu0 0.0
        %1549 = vmatpush2.msra.mxu0 0.0
        %1550 = vmatprep.subr.mxu0 0.0
        %1551 = vmatpush2.msra.mxu0 0.0
        %1552 = vmatprep.subr.mxu0 0.0
        %1553 = vmatpush2.msra.mxu0 0.0
        %1554 = vmatprep.subr.mxu0 0.0
        %1555 = vmatpush2.msra.mxu0 0.0
        %1556 = vmatprep.subr.mxu0 0.0
        %1557 = vmatpush2.msra.mxu0 0.0
        %1558 = vmatprep.subr.mxu0 0.0
        %1559 = vmatpush2.msra.mxu0 0.0
        %1560 = vmatprep.mubr.f32.mxu0 0.0
        %1561 = vmatmul.mubr.f32.gmra.mxu0 %v1473
        %v1562 = vpop.f32.mrf.mxu0
        %v1563 = vadd.f32 %v1434, %v1562
        %v1564 = vpop.f32.mrf.mxu0
        %1565 = vmatprep.mubr.f32.mxu0 0.0
        %1566 = vmatmul.mubr.f32.gmra.mxu0 %v1476
        %v1567 = vpop.f32.mrf.mxu0
        %v1568 = vadd.f32 %v1439, %v1567
        %v1569 = vpop.f32.mrf.mxu0
        %1570 = vmatprep.mubr.f32.mxu0 0.0
        %1571 = vmatmul.mubr.f32.gmra.mxu0 %v1479
        %v1572 = vpop.f32.mrf.mxu0
        %v1573 = vadd.f32 %v1444, %v1572
        %v1574 = vpop.f32.mrf.mxu0
        %1575 = vmatprep.mubr.f32.mxu0 0.0
        %1576 = vmatmul.mubr.f32.gmra.mxu0 %v1482
        %v1577 = vpop.f32.mrf.mxu0
        %v1578 = vadd.f32 %v1449, %v1577
        %v1579 = vpop.f32.mrf.mxu0
        %1580 = vmatprep.mubr.f32.mxu0 0.0
        %1581 = vmatmul.mubr.f32.gmra.mxu0 %v1485
        %v1582 = vpop.f32.mrf.mxu0
        %v1583 = vadd.f32 %v1454, %v1582
        %v1584 = vpop.f32.mrf.mxu0
        %1585 = vmatprep.mubr.f32.mxu0 0.0
        %1586 = vmatmul.mubr.f32.gmra.mxu0 %v1488
        %v1587 = vpop.f32.mrf.mxu0
        %v1588 = vadd.f32 %v1459, %v1587
        %v1589 = vpop.f32.mrf.mxu0
        %1590 = vmatprep.mubr.f32.mxu0 0.0
        %1591 = vmatmul.mubr.f32.gmra.mxu0 %v1491
        %v1592 = vpop.f32.mrf.mxu0
        %v1593 = vadd.f32 %v1464, %v1592
        %v1594 = vpop.f32.mrf.mxu0
        %1595 = vmatprep.mubr.f32.mxu0 0.0
        %1596 = vmatmul.mubr.f32.gmra.mxu0 %v1494
        %v1597 = vpop.f32.mrf.mxu0
        %v1598 = vadd.f32 %v1469, %v1597
        %v1599 = vpop.f32.mrf.mxu0
        %1600 = vdwg.mxu0
        %1601 = vst.msk [vmem:[%s369] sm:$0xff] %vm391, %v1563
        %1602 = vst.msk [vmem:[%s369 + $0x8] sm:$0xff] %vm391, %v1568
        %1603 = vst.msk [vmem:[%s369 + $0x10] sm:$0xff] %vm391, %v1573
        %1604 = vst.msk [vmem:[%s369 + $0x18] sm:$0xff] %vm391, %v1578
        %1605 = vst.msk [vmem:[%s369 + $0x20] sm:$0xff] %vm391, %v1583
        %1606 = vst.msk [vmem:[%s369 + $0x28] sm:$0xff] %vm391, %v1588
        %1607 = vst.msk [vmem:[%s369 + $0x30] sm:$0xff] %vm391, %v1593
        %1608 = vst.msk [vmem:[%s369 + $0x38] sm:$0xff] %vm391, %v1598
        %s1609 = smul.u32 8, %s27
        %p1610 = scmp.lt.s32.totalorder %s26, 1
        %s1611 = scalar_select %p1610, %s26, 1
        %p1612 = scmp.lt.s32.totalorder %s1609, 7
        %s1613 = scalar_select %p1612, %s1609, 7
        %s1614 = smul.addr %s1611, 8
        %s1615 = sadd.s32 %s1613, %s1614
        %s1616 = smul.addr %s1615, 8
        %s1617 = scalar_lea.vmem %s6, %s1616
        %s1618 = sand.u32 %s215, 1
        %s1619 = scalar_lea.sflag [#allocation3], %s1618
        %s1620 = sand.u32 %s215, 1
        %s1621 = smul.addr %s1620, 128
        %s1622 = scalar_lea.vmem [#allocation2], %s1621
        // Predicated region
        $region45: #{tpu_custom_call.1} parent=43 // pred_check
          %p1623 = pneg %p197
        $region46: #{tpu_custom_call.1} parent=43 // pred_check_branch
          %1625 = sbr.rel (%p1623) target = $region48
        $region47: #{tpu_custom_call.1} parent=43 // pred_region
          %s1626 = smul.u32 8, %s27
        $region48: #{tpu_custom_call.1} parent=43 // pred_fallthru
          _
        // Predicated region
        $region49: #{tpu_custom_call.1} parent=43 // pred_check
          %p1627 = pneg %p225
        $region50: #{tpu_custom_call.1} parent=43 // pred_check_branch
          %1629 = sbr.rel (%p1627) target = $region52
        $region51: #{tpu_custom_call.1} parent=43 // pred_region
          %s1630 = smul.u32 8, %s27
          %s1632 = ssub.s32 2048, 2048
          %1633 = vsyncadd %s1619, %s1632
          %s1634 = smul.addr %s26, 16
          %s1635 = sadd.s32 %s1630, %s1634
          %s1636 = smul.addr %s1635, 128
          %s1637 = scalar_lea.hbm %s7, %s1636
          %s1638 = sshll.u32 %s1622, 4
          %s1639 = int_to_ptr.vmem [resolvable:$true] %s1638
          %1644 = dma.vmem_to_hbm [thread:$0]  %s1639, 2048, %s1637, %s1619, 128, 128, 8
        $region52: #{tpu_custom_call.1} parent=43 // pred_fallthru
          _
      $region44: #{tpu_custom_call.1} parent=5 // pred_fallthru
        _
      %p1645 = scmp.le.s32.totalorder 2, %s17
      // Predicated region
      $region53: #{tpu_custom_call.1} parent=5 // pred_check
        %p1646 = pneg %p1645
      $region54: #{tpu_custom_call.1} parent=5 // pred_check_branch
        %1648 = sbr.rel (%p1646) target = $region56
      $region55: #{tpu_custom_call.1} parent=5 // pred_region
        %s1649 = ssub.s32 %s17, 2
        // Predicated region
        $region57: #{tpu_custom_call.1} parent=55 // pred_check
          %p1650 = pneg %p203
        $region58: #{tpu_custom_call.1} parent=55 // pred_check_branch
          %1652 = sbr.rel (%p1650) target = $region60
        $region59: #{tpu_custom_call.1} parent=55 // pred_region
          %s1653 = smul.u32 8, %s29
          %p1654 = scmp.lt.s32.totalorder %s28, 1
          %s1655 = scalar_select %p1654, %s28, 1
          %p1656 = scmp.lt.s32.totalorder %s1653, 7
          %s1657 = scalar_select %p1656, %s1653, 7
          %s1658 = smul.addr %s1655, 8
          %s1659 = sadd.s32 %s1657, %s1658
          %s1660 = smul.addr %s1659, 8
          %s1661 = scalar_lea.vmem %s6, %s1660
        $region60: #{tpu_custom_call.1} parent=55 // pred_fallthru
          _
        // Predicated region
        $region61: #{tpu_custom_call.1} parent=55 // pred_check
          %p1662 = pneg %p231
        $region62: #{tpu_custom_call.1} parent=55 // pred_check_branch
          %1664 = sbr.rel (%p1662) target = $region64
        $region63: #{tpu_custom_call.1} parent=55 // pred_region
          %s1665 = sand.u32 %s216, 1
          %s1666 = scalar_lea.sflag [#allocation3], %s1665
          %s1667 = sand.u32 %s216, 1
          %s1668 = smul.addr %s1667, 128
          %s1669 = scalar_lea.vmem [#allocation2], %s1668
          %1670 = dma.done %s1666, 2048
        $region64: #{tpu_custom_call.1} parent=55 // pred_fallthru
          _
      $region56: #{tpu_custom_call.1} parent=5 // pred_fallthru
        _
    $region6: #{tpu_custom_call.1} parent=1 // loop_footer
      %s21 = sadd.s32 1, %s17
    $region7: #{tpu_custom_call.1} parent=1 // loop_footer_branch
      %16 = sbr.rel target = $region3
    $region8: #{tpu_custom_call.1} parent=1 // loop_exit
      _
    %1671 = vsyncpa [#allocation3], 1
    %s1672 = scalar_lea.sflag [#allocation3], 1
    %1673 = vsyncpa %s1672, 1

</llo_original>
